<compile_context>
chip_gen: v7x
topology: tpu7x:2x2x1
jax: 0.10.0
libtpu: 0.0.40
codegen_flags: <defaults>
</compile_context>

<pallas_src>
import functools

import jax
import jax.numpy as jnp
from jax import lax
from jax.experimental import pallas as pl
from jax.experimental.pallas import tpu as pltpu


# ----------------------------------------------------------------------------
# Pallas kernel: pre(1x1) -> WN (fused dilated conv + gated act + res/skip)
# -> proj(1x1), all masked.  One batch element per grid step ("parallel").
# Activations are channels-last (T, C/H); the final projection is produced
# transposed as (C, T) so the output already matches torch's (B, C, T).
# ----------------------------------------------------------------------------
def _ying_decoder_kernel(x_ref, mask_tc_ref, mask_ct_ref, w_ref, b_ref, pjb_ref,
                         out_ref, pad_ref, *,
                         n_layers, kernel_size, dilation_rate, hidden, lead):
    f32, bf16 = jnp.float32, jnp.bfloat16
    L, K, H = n_layers, kernel_size, hidden
    T = x_ref.shape[1]
    C = x_ref.shape[2]

    # static row offsets into the packed weight / bias slabs
    OW_INA = C                      # tanh-gate conv weights   (L*K*H rows)
    OW_INB = OW_INA + L * K * H     # sigmoid-gate conv weights
    OW_RSR = OW_INB + L * K * H     # residual 1x1 weights     ((L-1)*H rows)
    OW_RSS = OW_RSR + (L - 1) * H   # skip 1x1 weights         (L*H rows)
    OW_PRJ = OW_RSS + L * H         # proj weights (C rows, stored out x in)
    OB_INA = 1
    OB_INB = OB_INA + L
    OB_RSR = OB_INB + L
    OB_RSS = OB_RSR + (L - 1)

    x = x_ref[0]                                          # (T, C) f32
    mask_h = jnp.broadcast_to(mask_tc_ref[0], (T, H))     # hoisted mask broadcast
    mask_t = mask_ct_ref[0]                               # (1, T)

    # zero the conv guard bands once per batch step (centre rewritten every layer)
    pad_ref[...] = jnp.zeros_like(pad_ref)

    # pre: 1x1 conv == matmul over channels
    h = (jnp.dot(x.astype(bf16), w_ref[0:C, :], preferred_element_type=f32)
         + b_ref[0:1, :]) * mask_h                        # (T, H) f32
    skip = jnp.zeros((T, H), f32)

    for i in range(L):
        dil = dilation_rate ** i
        pad_i = dil * (K - 1) // 2

        # write h into the zero-guarded scratch; taps are static sublane-offset reads
        pad_ref[lead:lead + T, :] = h
        base = lead - pad_i
        taps = [pad_ref[base + k * dil: base + k * dil + T, :] for k in range(K)]
        stacked = jnp.concatenate(taps, axis=-1).astype(bf16)        # (T, K*H)

        # fused dilated conv: a single matmul per gate half (lane-aligned outputs)
        ra = OW_INA + i * K * H
        rb = OW_INB + i * K * H
        g_t = (jnp.dot(stacked, w_ref[ra:ra + K * H, :], preferred_element_type=f32)
               + b_ref[OB_INA + i:OB_INA + i + 1, :])
        g_s = (jnp.dot(stacked, w_ref[rb:rb + K * H, :], preferred_element_type=f32)
               + b_ref[OB_INB + i:OB_INB + i + 1, :])
        acts = (jnp.tanh(g_t) * jax.nn.sigmoid(g_s)).astype(bf16)    # (T, H)

        if i < L - 1:   # last WN layer has no residual path (torch skips the x update)
            rr = OW_RSR + i * H
            res = (jnp.dot(acts, w_ref[rr:rr + H, :], preferred_element_type=f32)
                   + b_ref[OB_RSR + i:OB_RSR + i + 1, :])
            h = (h + res) * mask_h
        rs = OW_RSS + i * H
        skip = skip + (jnp.dot(acts, w_ref[rs:rs + H, :], preferred_element_type=f32)
                       + b_ref[OB_RSS + i:OB_RSS + i + 1, :])

    # WN output mask, then transpose in f32 (robust relayout) and cast for the MXU
    skip_t = (skip * mask_h).T.astype(bf16)               # (H, T)

    # proj 1x1 emitted directly as (C, T): lane-dense in T, no wrapper transpose
    y = (jnp.dot(w_ref[OW_PRJ:OW_PRJ + C, :], skip_t, preferred_element_type=f32)
         + pjb_ref[...]) * mask_t                         # (C, T)
    out_ref[0] = y


# ----------------------------------------------------------------------------
# Parameter packing (single bf16 weight slab + f32 bias slab)
# ----------------------------------------------------------------------------
def pack_params(params, cfg):
    H, K, L = cfg["hidden_channels"], cfg["kernel_size"], cfg["n_layers"]
    w_slab = jnp.concatenate([
        params["pre_w"],                                   # (C, H)
        params["in_w_a"].reshape(L * K * H, H),            # tanh half
        params["in_w_b"].reshape(L * K * H, H),            # sigmoid half
        params["rs_res_w"].reshape((L - 1) * H, H),        # residual 1x1
        params["rs_skip_w"].reshape(L * H, H),             # skip 1x1
        params["proj_w"],                                  # (C, H) (out x in)
    ], axis=0).astype(jnp.bfloat16)
    b_slab = jnp.concatenate([
        params["pre_b"],                                   # (1, H)
        params["in_b_a"],                                  # (L, H)
        params["in_b_b"],                                  # (L, H)
        params["rs_res_b"],                                # (L-1, H)
        params["rs_skip_b"],                               # (L, H)
    ], axis=0).astype(jnp.float32)
    return w_slab, b_slab, params["proj_b"].astype(jnp.float32)    # (C, 1)


# ----------------------------------------------------------------------------
# pallas_call wrapper — takes torch-layout (B, C, T) crop + (B, 1, T) mask,
# returns (B, C, T).
# ----------------------------------------------------------------------------
def ying_decoder_pallas(params, z_yin_crop, z_mask, cfg):
    B, C, T = z_yin_crop.shape
    H = cfg["hidden_channels"]
    K = cfg["kernel_size"]
    L = cfg["n_layers"]
    DR = cfg["dilation_rate"]
    max_pad = DR ** (L - 1) * (K - 1) // 2
    lead = ((max_pad + 7) // 8) * 8        # sublane-align the scratch centre write
    trail = ((max_pad + 7) // 8) * 8       # keep total scratch rows 8-aligned

    w_slab, b_slab, proj_b = pack_params(params, cfg)
    RW, RB = w_slab.shape[0], b_slab.shape[0]

    x_tc = jnp.transpose(z_yin_crop, (0, 2, 1))            # (B, T, C) channels-last
    mask_tc = jnp.transpose(z_mask, (0, 2, 1))             # (B, T, 1)
    mask_ct = z_mask                                       # (B, 1, T)

    kernel = functools.partial(
        _ying_decoder_kernel,
        n_layers=L, kernel_size=K, dilation_rate=DR, hidden=H, lead=lead)

    return pl.pallas_call(
        kernel,
        out_shape=jax.ShapeDtypeStruct((B, C, T), jnp.float32),
        grid=(B,),
        in_specs=[
            pl.BlockSpec((1, T, C), lambda b: (b, 0, 0)),   # z_yin_crop (channels-last)
            pl.BlockSpec((1, T, 1), lambda b: (b, 0, 0)),   # mask, time-on-sublanes
            pl.BlockSpec((1, 1, T), lambda b: (b, 0, 0)),   # mask, time-on-lanes
            pl.BlockSpec((RW, H), lambda b: (0, 0)),        # packed weights (bf16)
            pl.BlockSpec((RB, H), lambda b: (0, 0)),        # packed biases (f32)
            pl.BlockSpec((C, 1), lambda b: (0, 0)),         # proj bias
        ],
        out_specs=pl.BlockSpec((1, C, T), lambda b: (b, 0, 0)),
        scratch_shapes=[pltpu.VMEM((lead + T + trail, H), jnp.float32)],
        compiler_params=pltpu.CompilerParams(
            dimension_semantics=("parallel",)),             # feeds both v7x TCs
    )(x_tc, mask_tc, mask_ct, w_slab, b_slab, proj_b)


# ----------------------------------------------------------------------------
# Parameter init (deterministic, synthetic) — follows the torch module structure.
# Conv1d weights are stored per-tap transposed (in, out); proj stays (out, in).
# ----------------------------------------------------------------------------
def init_params(key, cfg):
    H, K, L = cfg["hidden_channels"], cfg["kernel_size"], cfg["n_layers"]
    C = cfg["yin_scope"]
    ks = jax.random.split(key, 12)
    s = 0.1
    p = dict(
        pre_w=jax.random.normal(ks[0], (C, H), jnp.float32) * s,
        pre_b=jax.random.normal(ks[1], (1, H), jnp.float32) * s,
        in_w_a=jax.random.normal(ks[2], (L, K, H, H), jnp.float32) * s,   # tanh half
        in_w_b=jax.random.normal(ks[3], (L, K, H, H), jnp.float32) * s,   # sigmoid half
        in_b_a=jax.random.normal(ks[4], (L, H), jnp.float32) * s,
        in_b_b=jax.random.normal(ks[5], (L, H), jnp.float32) * s,
        rs_res_w=jax.random.normal(ks[6], (L - 1, H, H), jnp.float32) * s,
        rs_res_b=jax.random.normal(ks[7], (L - 1, H), jnp.float32) * s,
        rs_skip_w=jax.random.normal(ks[8], (L, H, H), jnp.float32) * s,
        rs_skip_b=jax.random.normal(ks[9], (L, H), jnp.float32) * s,
        proj_w=jax.random.normal(ks[10], (C, H), jnp.float32) * s,
        proj_b=jax.random.normal(ks[11], (C, 1), jnp.float32) * s,
    )
    # TODO(synk): weight_norm g/v decomposition not modeled (identity at fresh init);
    #             fold g into v before loading trained torch weights.
    return p


# ----------------------------------------------------------------------------
# Full forward (matches YingDecoder.forward semantics; g conditioning unsupported)
# ----------------------------------------------------------------------------
def crop_scope(x, yin_start, yin_scope, scope_shift):
    """x: (B, yin_total, T) -> (B, yin_scope, T), per-batch shifted crop along dim 1."""
    def one(xi, si):
        return lax.dynamic_slice_in_dim(xi, yin_start + si, yin_scope, axis=0)
    return jax.vmap(one)(x, scope_shift)


def ying_decoder_forward(params, z_yin, yin_gt, z_mask, scope_shift, cfg):
    ys, sc = cfg["yin_start"], cfg["yin_scope"]
    z_yin_crop = crop_scope(z_yin, ys, sc, scope_shift)                 # (B, sc, T)
    yin_gt_shifted_crop = crop_scope(yin_gt, ys, sc, scope_shift)
    yin_gt_crop = crop_scope(yin_gt, ys, sc, jnp.zeros_like(scope_shift))
    # TODO(synk): gin_channels>0 conditioning path (g) is not implemented.
    yin_hat_crop = ying_decoder_pallas(params, z_yin_crop, z_mask, cfg)  # (B, sc, T)
    return yin_gt_crop, yin_gt_shifted_crop, yin_hat_crop, z_yin_crop, scope_shift


# ----------------------------------------------------------------------------
# Pure-JAX f32 reference of the hot path (torch layout in / out)
# ----------------------------------------------------------------------------
def ref_decoder(params, z_yin_crop, z_mask, cfg):
    H, K, L, DR = (cfg["hidden_channels"], cfg["kernel_size"],
                   cfg["n_layers"], cfg["dilation_rate"])
    x_tc = jnp.transpose(z_yin_crop, (0, 2, 1))
    mask_tc = jnp.transpose(z_mask, (0, 2, 1))
    B, T, _ = x_tc.shape
    h = (jnp.einsum("btc,ch->bth", x_tc, params["pre_w"]) + params["pre_b"]) * mask_tc
    skip = jnp.zeros_like(h)
    for i in range(L):
        dil = DR ** i
        pad = dil * (K - 1) // 2
        hp = jnp.pad(h, ((0, 0), (pad, pad), (0, 0)))
        ga = jnp.zeros((B, T, H), jnp.float32) + params["in_b_a"][i]
        gb = jnp.zeros((B, T, H), jnp.float32) + params["in_b_b"][i]
        for k in range(K):
            tap = hp[:, k * dil:k * dil + T, :]
            ga = ga + jnp.einsum("bth,hc->btc", tap, params["in_w_a"][i, k])
            gb = gb + jnp.einsum("bth,hc->btc", tap, params["in_w_b"][i, k])
        acts = jnp.tanh(ga) * jax.nn.sigmoid(gb)
        if i < L - 1:
            res = (jnp.einsum("bth,hc->btc", acts, params["rs_res_w"][i])
                   + params["rs_res_b"][i])
            h = (h + res) * mask_tc
        skip = skip + (jnp.einsum("bth,hc->btc", acts, params["rs_skip_w"][i])
                       + params["rs_skip_b"][i])
    skip = skip * mask_tc
    y = (jnp.einsum("bth,ch->btc", skip, params["proj_w"])
         + params["proj_b"][:, 0]) * mask_tc
    return jnp.transpose(y, (0, 2, 1))                                  # (B, C, T)


# ----------------------------------------------------------------------------
if __name__ == "__main__":
    cfg = dict(hidden_channels=32, kernel_size=3, dilation_rate=2, n_layers=3,
               yin_start=4, yin_scope=16, yin_shift_range=2, gin_channels=0)
    B, T = 2, 16
    yin_total = cfg["yin_start"] + cfg["yin_scope"] + cfg["yin_shift_range"]  # 22

    key = jax.random.PRNGKey(0)
    k1, k2, k3, k4 = jax.random.split(key, 4)

    z_yin = jax.random.normal(k1, (B, yin_total, T), jnp.float32)
    yin_gt = jax.random.normal(k2, (B, yin_total, T), jnp.float32)
    lengths = jnp.array([T, T - 4])
    z_mask = (jnp.arange(T)[None, None, :] < lengths[:, None, None]).astype(jnp.float32)
    # torch.randint(-r, r, (B,)) equivalent (generated outside, passed in)
    scope_shift = jax.random.randint(
        k3, (B,), -cfg["yin_shift_range"], cfg["yin_shift_range"], dtype=jnp.int32)

    params = init_params(k4, cfg)

    outs = ying_decoder_forward(params, z_yin, yin_gt, z_mask, scope_shift, cfg)
    outs = jax.block_until_ready(outs)
    yin_gt_crop, yin_gt_shifted_crop, yin_hat_crop, z_yin_crop, shifts = outs

    # verify kernel against pure-JAX f32 reference (kernel uses bf16 MXU inputs with
    # f32 accumulation, so the tolerance is loosened accordingly)
    ref = ref_decoder(params, z_yin_crop, z_mask, cfg)
    assert yin_hat_crop.shape == (B, cfg["yin_scope"], T)
    max_err = float(jnp.max(jnp.abs(yin_hat_crop - ref)))
    assert jnp.allclose(yin_hat_crop, ref, atol=5e-2, rtol=5e-2), \
        f"mismatch vs reference (max abs err {max_err:.4e})"

    print("KERNEL_OK")
</pallas_src>

<mosaic_0001>
module attributes {stable_mosaic.version = 11 : i64} {
  func.func @_ying_decoder_kernel(%arg0: i32, %arg1: memref<1x16x16xf32, #tpu.memory_space<vmem>>, %arg2: memref<1x16x1xf32, #tpu.memory_space<vmem>>, %arg3: memref<1x1x16xf32, #tpu.memory_space<vmem>>, %arg4: memref<768x32xbf16, #tpu.memory_space<vmem>>, %arg5: memref<12x32xf32, #tpu.memory_space<vmem>>, %arg6: memref<16x1xf32, #tpu.memory_space<vmem>>, %arg7: memref<1x16x16xf32, #tpu.memory_space<vmem>>, %arg8: memref<32x32xf32, #tpu.memory_space<vmem>>) attributes {dimension_semantics = [#tpu.dimension_semantics<parallel>], iteration_bounds = array<i64: 2>, scalar_prefetch = 0 : i64, scratch_operands = 1 : i64, tpu.core_type = #tpu.core_type<tc>, window_params = [{transform_indices = @transform_0, window_bounds = array<i64: 1, 16, 16>}, {transform_indices = @transform_1, window_bounds = array<i64: 1, 16, 1>}, {transform_indices = @transform_2, window_bounds = array<i64: 1, 1, 16>}, {pipeline_mode = #tpu.pipeline_mode<synchronous>, transform_indices = @transform_3, window_bounds = array<i64: 768, 32>}, {pipeline_mode = #tpu.pipeline_mode<synchronous>, transform_indices = @transform_4, window_bounds = array<i64: 12, 32>}, {pipeline_mode = #tpu.pipeline_mode<synchronous>, transform_indices = @transform_5, window_bounds = array<i64: 16, 1>}, {transform_indices = @transform_6, window_bounds = array<i64: 1, 16, 16>}]} {
    %c0 = arith.constant 0 : index
    %c0_0 = arith.constant 0 : index
    %c0_1 = arith.constant 0 : index
    %0 = vector.load %arg1[%c0, %c0_0, %c0_1] : memref<1x16x16xf32, #tpu.memory_space<vmem>>, vector<1x16x16xf32>
    %1 = vector.shape_cast %0 : vector<1x16x16xf32> to vector<16x16xf32>
    %c0_2 = arith.constant 0 : index
    %c0_3 = arith.constant 0 : index
    %c0_4 = arith.constant 0 : index
    %2 = vector.load %arg2[%c0_2, %c0_3, %c0_4] : memref<1x16x1xf32, #tpu.memory_space<vmem>>, vector<1x16x1xf32>
    %3 = vector.shape_cast %2 : vector<1x16x1xf32> to vector<16x1xf32>
    %4 = vector.shape_cast %3 : vector<16x1xf32> to vector<16x1xf32>
    %5 = vector.broadcast %4 : vector<16x1xf32> to vector<16x32xf32>
    %c0_5 = arith.constant 0 : index
    %c0_6 = arith.constant 0 : index
    %c0_7 = arith.constant 0 : index
    %6 = vector.load %arg3[%c0_5, %c0_6, %c0_7] : memref<1x1x16xf32, #tpu.memory_space<vmem>>, vector<1x1x16xf32>
    %7 = vector.shape_cast %6 : vector<1x1x16xf32> to vector<1x16xf32>
    %cst = arith.constant 0.000000e+00 : f32
    %8 = vector.broadcast %cst : f32 to vector<32x32xf32>
    %c0_8 = arith.constant 0 : index
    %c0_9 = arith.constant 0 : index
    %9 = vector.load %arg8[%c0_8, %c0_9] : memref<32x32xf32, #tpu.memory_space<vmem>>, vector<32x32xf32>
    tpu.vector_store %arg8[%c0_8, %c0_9], %8 {strides = array<i32>} : memref<32x32xf32, #tpu.memory_space<vmem>>, vector<32x32xf32>,
    %10 = arith.truncf %1 : vector<16x16xf32> to vector<16x16xbf16>
    %c0_10 = arith.constant 0 : index
    %c0_11 = arith.constant 0 : index
    %11 = vector.load %arg4[%c0_10, %c0_11] : memref<768x32xbf16, #tpu.memory_space<vmem>>, vector<16x32xbf16>
    %cst_12 = arith.constant dense<0.000000e+00> : vector<16x32xf32>
    %12 = tpu.matmul %10, %11, %cst_12 {dimension_numbers = #tpu.dot_dimension_numbers<[1], [0], [0], [1], [0, 0, 1, 1], [], []>} : vector<16x16xbf16>, vector<16x32xbf16>, vector<16x32xf32> -> vector<16x32xf32>
    %c0_13 = arith.constant 0 : index
    %c0_14 = arith.constant 0 : index
    %13 = vector.load %arg5[%c0_13, %c0_14] : memref<12x32xf32, #tpu.memory_space<vmem>>, vector<1x32xf32>
    %14 = vector.broadcast %13 : vector<1x32xf32> to vector<16x32xf32>
    %15 = arith.addf %12, %14 : vector<16x32xf32>
    %16 = arith.mulf %15, %5 : vector<16x32xf32>
    %cst_15 = arith.constant 0.000000e+00 : f32
    %17 = vector.broadcast %cst_15 : f32 to vector<16x32xf32>
    %c8 = arith.constant 8 : index
    %c0_16 = arith.constant 0 : index
    %18 = vector.load %arg8[%c8, %c0_16] : memref<32x32xf32, #tpu.memory_space<vmem>>, vector<16x32xf32>
    tpu.vector_store %arg8[%c8, %c0_16], %16 {strides = array<i32>} : memref<32x32xf32, #tpu.memory_space<vmem>>, vector<16x32xf32>,
    %c7 = arith.constant 7 : index
    %c0_17 = arith.constant 0 : index
    %19 = vector.load %arg8[%c7, %c0_17] : memref<32x32xf32, #tpu.memory_space<vmem>>, vector<16x32xf32>
    %c8_18 = arith.constant 8 : index
    %c0_19 = arith.constant 0 : index
    %20 = vector.load %arg8[%c8_18, %c0_19] : memref<32x32xf32, #tpu.memory_space<vmem>>, vector<16x32xf32>
    %c9 = arith.constant 9 : index
    %c0_20 = arith.constant 0 : index
    %21 = vector.load %arg8[%c9, %c0_20] : memref<32x32xf32, #tpu.memory_space<vmem>>, vector<16x32xf32>
    %22 = tpu.concatenate %19, %20, %21 in 1 : vector<16x32xf32>, vector<16x32xf32>, vector<16x32xf32> -> vector<16x96xf32>
    %23 = arith.truncf %22 : vector<16x96xf32> to vector<16x96xbf16>
    %c16 = arith.constant 16 : index
    %c0_21 = arith.constant 0 : index
    %24 = vector.load %arg4[%c16, %c0_21] : memref<768x32xbf16, #tpu.memory_space<vmem>>, vector<96x32xbf16>
    %cst_22 = arith.constant dense<0.000000e+00> : vector<16x32xf32>
    %25 = tpu.matmul %23, %24, %cst_22 {dimension_numbers = #tpu.dot_dimension_numbers<[1], [0], [0], [1], [0, 0, 1, 1], [], []>} : vector<16x96xbf16>, vector<96x32xbf16>, vector<16x32xf32> -> vector<16x32xf32>
    %c1 = arith.constant 1 : index
    %c0_23 = arith.constant 0 : index
    %26 = vector.load %arg5[%c1, %c0_23] : memref<12x32xf32, #tpu.memory_space<vmem>>, vector<1x32xf32>
    %27 = vector.broadcast %26 : vector<1x32xf32> to vector<16x32xf32>
    %28 = arith.addf %25, %27 : vector<16x32xf32>
    %c304 = arith.constant 304 : index
    %c0_24 = arith.constant 0 : index
    %29 = vector.load %arg4[%c304, %c0_24] : memref<768x32xbf16, #tpu.memory_space<vmem>>, vector<96x32xbf16>
    %cst_25 = arith.constant dense<0.000000e+00> : vector<16x32xf32>
    %30 = tpu.matmul %23, %29, %cst_25 {dimension_numbers = #tpu.dot_dimension_numbers<[1], [0], [0], [1], [0, 0, 1, 1], [], []>} : vector<16x96xbf16>, vector<96x32xbf16>, vector<16x32xf32> -> vector<16x32xf32>
    %c4 = arith.constant 4 : index
    %c0_26 = arith.constant 0 : index
    %31 = vector.load %arg5[%c4, %c0_26] : memref<12x32xf32, #tpu.memory_space<vmem>>, vector<1x32xf32>
    %32 = vector.broadcast %31 : vector<1x32xf32> to vector<16x32xf32>
    %33 = arith.addf %30, %32 : vector<16x32xf32>
    %34 = math.tanh %28 : vector<16x32xf32>
    %35 = arith.negf %33 : vector<16x32xf32>
    %36 = math.exp %35 : vector<16x32xf32>
    %cst_27 = arith.constant 1.000000e+00 : f32
    %37 = vector.broadcast %cst_27 : f32 to vector<16x32xf32>
    %38 = arith.addf %37, %36 : vector<16x32xf32>
    %39 = arith.divf %37, %38 : vector<16x32xf32>
    %40 = arith.mulf %34, %39 : vector<16x32xf32>
    %41 = arith.truncf %40 : vector<16x32xf32> to vector<16x32xbf16>
    %c592 = arith.constant 592 : index
    %c0_28 = arith.constant 0 : index
    %42 = vector.load %arg4[%c592, %c0_28] : memref<768x32xbf16, #tpu.memory_space<vmem>>, vector<32x32xbf16>
    %cst_29 = arith.constant dense<0.000000e+00> : vector<16x32xf32>
    %43 = tpu.matmul %41, %42, %cst_29 {dimension_numbers = #tpu.dot_dimension_numbers<[1], [0], [0], [1], [0, 0, 1, 1], [], []>} : vector<16x32xbf16>, vector<32x32xbf16>, vector<16x32xf32> -> vector<16x32xf32>
    %c7_30 = arith.constant 7 : index
    %c0_31 = arith.constant 0 : index
    %44 = vector.load %arg5[%c7_30, %c0_31] : memref<12x32xf32, #tpu.memory_space<vmem>>, vector<1x32xf32>
    %45 = vector.broadcast %44 : vector<1x32xf32> to vector<16x32xf32>
    %46 = arith.addf %43, %45 : vector<16x32xf32>
    %47 = arith.addf %16, %46 : vector<16x32xf32>
    %48 = arith.mulf %47, %5 : vector<16x32xf32>
    %c656 = arith.constant 656 : index
    %c0_32 = arith.constant 0 : index
    %49 = vector.load %arg4[%c656, %c0_32] : memref<768x32xbf16, #tpu.memory_space<vmem>>, vector<32x32xbf16>
    %cst_33 = arith.constant dense<0.000000e+00> : vector<16x32xf32>
    %50 = tpu.matmul %41, %49, %cst_33 {dimension_numbers = #tpu.dot_dimension_numbers<[1], [0], [0], [1], [0, 0, 1, 1], [], []>} : vector<16x32xbf16>, vector<32x32xbf16>, vector<16x32xf32> -> vector<16x32xf32>
    %c9_34 = arith.constant 9 : index
    %c0_35 = arith.constant 0 : index
    %51 = vector.load %arg5[%c9_34, %c0_35] : memref<12x32xf32, #tpu.memory_space<vmem>>, vector<1x32xf32>
    %52 = vector.broadcast %51 : vector<1x32xf32> to vector<16x32xf32>
    %53 = arith.addf %50, %52 : vector<16x32xf32>
    %54 = arith.addf %17, %53 : vector<16x32xf32>
    %c8_36 = arith.constant 8 : index
    %c0_37 = arith.constant 0 : index
    %55 = vector.load %arg8[%c8_36, %c0_37] : memref<32x32xf32, #tpu.memory_space<vmem>>, vector<16x32xf32>
    tpu.vector_store %arg8[%c8_36, %c0_37], %48 {strides = array<i32>} : memref<32x32xf32, #tpu.memory_space<vmem>>, vector<16x32xf32>,
    %c6 = arith.constant 6 : index
    %c0_38 = arith.constant 0 : index
    %56 = vector.load %arg8[%c6, %c0_38] : memref<32x32xf32, #tpu.memory_space<vmem>>, vector<16x32xf32>
    %c8_39 = arith.constant 8 : index
    %c0_40 = arith.constant 0 : index
    %57 = vector.load %arg8[%c8_39, %c0_40] : memref<32x32xf32, #tpu.memory_space<vmem>>, vector<16x32xf32>
    %c10 = arith.constant 10 : index
    %c0_41 = arith.constant 0 : index
    %58 = vector.load %arg8[%c10, %c0_41] : memref<32x32xf32, #tpu.memory_space<vmem>>, vector<16x32xf32>
    %59 = tpu.concatenate %56, %57, %58 in 1 : vector<16x32xf32>, vector<16x32xf32>, vector<16x32xf32> -> vector<16x96xf32>
    %60 = arith.truncf %59 : vector<16x96xf32> to vector<16x96xbf16>
    %c112 = arith.constant 112 : index
    %c0_42 = arith.constant 0 : index
    %61 = vector.load %arg4[%c112, %c0_42] : memref<768x32xbf16, #tpu.memory_space<vmem>>, vector<96x32xbf16>
    %cst_43 = arith.constant dense<0.000000e+00> : vector<16x32xf32>
    %62 = tpu.matmul %60, %61, %cst_43 {dimension_numbers = #tpu.dot_dimension_numbers<[1], [0], [0], [1], [0, 0, 1, 1], [], []>} : vector<16x96xbf16>, vector<96x32xbf16>, vector<16x32xf32> -> vector<16x32xf32>
    %c2 = arith.constant 2 : index
    %c0_44 = arith.constant 0 : index
    %63 = vector.load %arg5[%c2, %c0_44] : memref<12x32xf32, #tpu.memory_space<vmem>>, vector<1x32xf32>
    %64 = vector.broadcast %63 : vector<1x32xf32> to vector<16x32xf32>
    %65 = arith.addf %62, %64 : vector<16x32xf32>
    %c400 = arith.constant 400 : index
    %c0_45 = arith.constant 0 : index
    %66 = vector.load %arg4[%c400, %c0_45] : memref<768x32xbf16, #tpu.memory_space<vmem>>, vector<96x32xbf16>
    %cst_46 = arith.constant dense<0.000000e+00> : vector<16x32xf32>
    %67 = tpu.matmul %60, %66, %cst_46 {dimension_numbers = #tpu.dot_dimension_numbers<[1], [0], [0], [1], [0, 0, 1, 1], [], []>} : vector<16x96xbf16>, vector<96x32xbf16>, vector<16x32xf32> -> vector<16x32xf32>
    %c5 = arith.constant 5 : index
    %c0_47 = arith.constant 0 : index
    %68 = vector.load %arg5[%c5, %c0_47] : memref<12x32xf32, #tpu.memory_space<vmem>>, vector<1x32xf32>
    %69 = vector.broadcast %68 : vector<1x32xf32> to vector<16x32xf32>
    %70 = arith.addf %67, %69 : vector<16x32xf32>
    %71 = math.tanh %65 : vector<16x32xf32>
    %72 = arith.negf %70 : vector<16x32xf32>
    %73 = math.exp %72 : vector<16x32xf32>
    %cst_48 = arith.constant 1.000000e+00 : f32
    %74 = vector.broadcast %cst_48 : f32 to vector<16x32xf32>
    %75 = arith.addf %74, %73 : vector<16x32xf32>
    %76 = arith.divf %74, %75 : vector<16x32xf32>
    %77 = arith.mulf %71, %76 : vector<16x32xf32>
    %78 = arith.truncf %77 : vector<16x32xf32> to vector<16x32xbf16>
    %c624 = arith.constant 624 : index
    %c0_49 = arith.constant 0 : index
    %79 = vector.load %arg4[%c624, %c0_49] : memref<768x32xbf16, #tpu.memory_space<vmem>>, vector<32x32xbf16>
    %cst_50 = arith.constant dense<0.000000e+00> : vector<16x32xf32>
    %80 = tpu.matmul %78, %79, %cst_50 {dimension_numbers = #tpu.dot_dimension_numbers<[1], [0], [0], [1], [0, 0, 1, 1], [], []>} : vector<16x32xbf16>, vector<32x32xbf16>, vector<16x32xf32> -> vector<16x32xf32>
    %c8_51 = arith.constant 8 : index
    %c0_52 = arith.constant 0 : index
    %81 = vector.load %arg5[%c8_51, %c0_52] : memref<12x32xf32, #tpu.memory_space<vmem>>, vector<1x32xf32>
    %82 = vector.broadcast %81 : vector<1x32xf32> to vector<16x32xf32>
    %83 = arith.addf %80, %82 : vector<16x32xf32>
    %84 = arith.addf %48, %83 : vector<16x32xf32>
    %85 = arith.mulf %84, %5 : vector<16x32xf32>
    %c688 = arith.constant 688 : index
    %c0_53 = arith.constant 0 : index
    %86 = vector.load %arg4[%c688, %c0_53] : memref<768x32xbf16, #tpu.memory_space<vmem>>, vector<32x32xbf16>
    %cst_54 = arith.constant dense<0.000000e+00> : vector<16x32xf32>
    %87 = tpu.matmul %78, %86, %cst_54 {dimension_numbers = #tpu.dot_dimension_numbers<[1], [0], [0], [1], [0, 0, 1, 1], [], []>} : vector<16x32xbf16>, vector<32x32xbf16>, vector<16x32xf32> -> vector<16x32xf32>
    %c10_55 = arith.constant 10 : index
    %c0_56 = arith.constant 0 : index
    %88 = vector.load %arg5[%c10_55, %c0_56] : memref<12x32xf32, #tpu.memory_space<vmem>>, vector<1x32xf32>
    %89 = vector.broadcast %88 : vector<1x32xf32> to vector<16x32xf32>
    %90 = arith.addf %87, %89 : vector<16x32xf32>
    %91 = arith.addf %54, %90 : vector<16x32xf32>
    %c8_57 = arith.constant 8 : index
    %c0_58 = arith.constant 0 : index
    %92 = vector.load %arg8[%c8_57, %c0_58] : memref<32x32xf32, #tpu.memory_space<vmem>>, vector<16x32xf32>
    tpu.vector_store %arg8[%c8_57, %c0_58], %85 {strides = array<i32>} : memref<32x32xf32, #tpu.memory_space<vmem>>, vector<16x32xf32>,
    %c4_59 = arith.constant 4 : index
    %c0_60 = arith.constant 0 : index
    %93 = vector.load %arg8[%c4_59, %c0_60] : memref<32x32xf32, #tpu.memory_space<vmem>>, vector<16x32xf32>
    %c8_61 = arith.constant 8 : index
    %c0_62 = arith.constant 0 : index
    %94 = vector.load %arg8[%c8_61, %c0_62] : memref<32x32xf32, #tpu.memory_space<vmem>>, vector<16x32xf32>
    %c12 = arith.constant 12 : index
    %c0_63 = arith.constant 0 : index
    %95 = vector.load %arg8[%c12, %c0_63] : memref<32x32xf32, #tpu.memory_space<vmem>>, vector<16x32xf32>
    %96 = tpu.concatenate %93, %94, %95 in 1 : vector<16x32xf32>, vector<16x32xf32>, vector<16x32xf32> -> vector<16x96xf32>
    %97 = arith.truncf %96 : vector<16x96xf32> to vector<16x96xbf16>
    %c208 = arith.constant 208 : index
    %c0_64 = arith.constant 0 : index
    %98 = vector.load %arg4[%c208, %c0_64] : memref<768x32xbf16, #tpu.memory_space<vmem>>, vector<96x32xbf16>
    %cst_65 = arith.constant dense<0.000000e+00> : vector<16x32xf32>
    %99 = tpu.matmul %97, %98, %cst_65 {dimension_numbers = #tpu.dot_dimension_numbers<[1], [0], [0], [1], [0, 0, 1, 1], [], []>} : vector<16x96xbf16>, vector<96x32xbf16>, vector<16x32xf32> -> vector<16x32xf32>
    %c3 = arith.constant 3 : index
    %c0_66 = arith.constant 0 : index
    %100 = vector.load %arg5[%c3, %c0_66] : memref<12x32xf32, #tpu.memory_space<vmem>>, vector<1x32xf32>
    %101 = vector.broadcast %100 : vector<1x32xf32> to vector<16x32xf32>
    %102 = arith.addf %99, %101 : vector<16x32xf32>
    %c496 = arith.constant 496 : index
    %c0_67 = arith.constant 0 : index
    %103 = vector.load %arg4[%c496, %c0_67] : memref<768x32xbf16, #tpu.memory_space<vmem>>, vector<96x32xbf16>
    %cst_68 = arith.constant dense<0.000000e+00> : vector<16x32xf32>
    %104 = tpu.matmul %97, %103, %cst_68 {dimension_numbers = #tpu.dot_dimension_numbers<[1], [0], [0], [1], [0, 0, 1, 1], [], []>} : vector<16x96xbf16>, vector<96x32xbf16>, vector<16x32xf32> -> vector<16x32xf32>
    %c6_69 = arith.constant 6 : index
    %c0_70 = arith.constant 0 : index
    %105 = vector.load %arg5[%c6_69, %c0_70] : memref<12x32xf32, #tpu.memory_space<vmem>>, vector<1x32xf32>
    %106 = vector.broadcast %105 : vector<1x32xf32> to vector<16x32xf32>
    %107 = arith.addf %104, %106 : vector<16x32xf32>
    %108 = math.tanh %102 : vector<16x32xf32>
    %109 = arith.negf %107 : vector<16x32xf32>
    %110 = math.exp %109 : vector<16x32xf32>
    %cst_71 = arith.constant 1.000000e+00 : f32
    %111 = vector.broadcast %cst_71 : f32 to vector<16x32xf32>
    %112 = arith.addf %111, %110 : vector<16x32xf32>
    %113 = arith.divf %111, %112 : vector<16x32xf32>
    %114 = arith.mulf %108, %113 : vector<16x32xf32>
    %115 = arith.truncf %114 : vector<16x32xf32> to vector<16x32xbf16>
    %c720 = arith.constant 720 : index
    %c0_72 = arith.constant 0 : index
    %116 = vector.load %arg4[%c720, %c0_72] : memref<768x32xbf16, #tpu.memory_space<vmem>>, vector<32x32xbf16>
    %cst_73 = arith.constant dense<0.000000e+00> : vector<16x32xf32>
    %117 = tpu.matmul %115, %116, %cst_73 {dimension_numbers = #tpu.dot_dimension_numbers<[1], [0], [0], [1], [0, 0, 1, 1], [], []>} : vector<16x32xbf16>, vector<32x32xbf16>, vector<16x32xf32> -> vector<16x32xf32>
    %c11 = arith.constant 11 : index
    %c0_74 = arith.constant 0 : index
    %118 = vector.load %arg5[%c11, %c0_74] : memref<12x32xf32, #tpu.memory_space<vmem>>, vector<1x32xf32>
    %119 = vector.broadcast %118 : vector<1x32xf32> to vector<16x32xf32>
    %120 = arith.addf %117, %119 : vector<16x32xf32>
    %121 = arith.addf %91, %120 : vector<16x32xf32>
    %122 = arith.mulf %121, %5 : vector<16x32xf32>
    %123 = tpu.transpose %122, [1, 0] : vector<16x32xf32> -> vector<32x16xf32>
    %124 = arith.truncf %123 : vector<32x16xf32> to vector<32x16xbf16>
    %c752 = arith.constant 752 : index
    %c0_75 = arith.constant 0 : index
    %125 = vector.load %arg4[%c752, %c0_75] : memref<768x32xbf16, #tpu.memory_space<vmem>>, vector<16x32xbf16>
    %cst_76 = arith.constant dense<0.000000e+00> : vector<16x16xf32>
    %126 = tpu.matmul %125, %124, %cst_76 {dimension_numbers = #tpu.dot_dimension_numbers<[1], [0], [0], [1], [0, 0, 1, 1], [], []>} : vector<16x32xbf16>, vector<32x16xbf16>, vector<16x16xf32> -> vector<16x16xf32>
    %c0_77 = arith.constant 0 : index
    %c0_78 = arith.constant 0 : index
    %127 = vector.load %arg6[%c0_77, %c0_78] : memref<16x1xf32, #tpu.memory_space<vmem>>, vector<16x1xf32>
    %128 = vector.broadcast %127 : vector<16x1xf32> to vector<16x16xf32>
    %129 = arith.addf %126, %128 : vector<16x16xf32>
    %130 = vector.broadcast %7 : vector<1x16xf32> to vector<16x16xf32>
    %131 = arith.mulf %129, %130 : vector<16x16xf32>
    %c0_79 = arith.constant 0 : index
    %c0_80 = arith.constant 0 : index
    %c0_81 = arith.constant 0 : index
    %132 = vector.load %arg7[%c0_79, %c0_80, %c0_81] : memref<1x16x16xf32, #tpu.memory_space<vmem>>, vector<1x16x16xf32>
    %133 = vector.shape_cast %132 : vector<1x16x16xf32> to vector<16x16xf32>
    %134 = vector.shape_cast %131 : vector<16x16xf32> to vector<1x16x16xf32>
    tpu.vector_store %arg7[%c0_79, %c0_80, %c0_81], %134 {strides = array<i32>} : memref<1x16x16xf32, #tpu.memory_space<vmem>>, vector<1x16x16xf32>,
    return
  }
  func.func @transform_0(%arg0: i32) -> (i32, i32, i32) {
    %c0_i32 = arith.constant 0 : i32
    %c0_i32_0 = arith.constant 0 : i32
    %c0_i32_1 = arith.constant 0 : i32
    return %arg0, %c0_i32, %c0_i32_0 : i32, i32, i32
  }
  func.func @transform_1(%arg0: i32) -> (i32, i32, i32) {
    %c0_i32 = arith.constant 0 : i32
    %c0_i32_0 = arith.constant 0 : i32
    %c0_i32_1 = arith.constant 0 : i32
    return %arg0, %c0_i32, %c0_i32_0 : i32, i32, i32
  }
  func.func @transform_2(%arg0: i32) -> (i32, i32, i32) {
    %c0_i32 = arith.constant 0 : i32
    %c0_i32_0 = arith.constant 0 : i32
    %c0_i32_1 = arith.constant 0 : i32
    return %arg0, %c0_i32, %c0_i32_0 : i32, i32, i32
  }
  func.func @transform_3(%arg0: i32) -> (i32, i32) {
    %c0_i32 = arith.constant 0 : i32
    %c0_i32_0 = arith.constant 0 : i32
    %c0_i32_1 = arith.constant 0 : i32
    return %c0_i32, %c0_i32_0 : i32, i32
  }
  func.func @transform_4(%arg0: i32) -> (i32, i32) {
    %c0_i32 = arith.constant 0 : i32
    %c0_i32_0 = arith.constant 0 : i32
    %c0_i32_1 = arith.constant 0 : i32
    return %c0_i32, %c0_i32_0 : i32, i32
  }
  func.func @transform_5(%arg0: i32) -> (i32, i32) {
    %c0_i32 = arith.constant 0 : i32
    %c0_i32_0 = arith.constant 0 : i32
    %c0_i32_1 = arith.constant 0 : i32
    return %c0_i32, %c0_i32_0 : i32, i32
  }
  func.func @transform_6(%arg0: i32) -> (i32, i32, i32) {
    %c0_i32 = arith.constant 0 : i32
    %c0_i32_0 = arith.constant 0 : i32
    %c0_i32_1 = arith.constant 0 : i32
    return %arg0, %c0_i32, %c0_i32_0 : i32, i32, i32
  }
}

</mosaic_0001>

<llo_original>
// kernel: tpu_custom_call.1
$region0: #{tpu_custom_call.1}
  #allocation0 [shape = 'u32[]', space=smem, size = 0x4, offset = 0x4, fixed_abs, tag = 'smem constant byte address 0x4 - core index']
  #allocation1 [shape = 'u32[144,128]{1,0:T(1,128)}', space=vmem, size = 0x12000, scoped, tag = 'internal scratch']
  #allocation2 [shape = 'f32[32,32]{1,0:T(8,128)}', space=vmem, size = 0x4000, scoped, tag = 'scratch operand']
  %s0 = inlined_call_operand.vmem [shape: f32[2,16,16], index: 0, kind: input, shape index: {}]
  %s1 = inlined_call_operand.vmem [shape: f32[2,16,1], index: 1, kind: input, shape index: {}]
  %s2 = inlined_call_operand.vmem [shape: f32[2,1,16], index: 2, kind: input, shape index: {}]
  %s3 = inlined_call_operand.vmem [shape: bf16[768,32], index: 3, kind: input, shape index: {}]
  %s4 = inlined_call_operand.vmem [shape: f32[12,32], index: 4, kind: input, shape index: {}]
  %s5 = inlined_call_operand.vmem [shape: f32[16,1], index: 5, kind: input, shape index: {}]
  %s6 = inlined_call_operand.hbm [shape: f32[2,16,16], index: 6, kind: output, shape index: {}]
  %s7 = sld [smem:[#allocation0]]
  $region57: #{tpu_custom_call.1} parent=0
    _
  %s9 = ssub.s32 1, %s7
  %s10 = scalar_select 0, %s9, %s7
  $region1: #{tpu_custom_call.1} parent=0
    #allocation3 [shape = 'u8[16384]{0}', space=vmem, size = 0x4000, scoped, tag = 'output window, operand 0']
    #allocation4 [shape = 's32[2]{0}', space=sflag, size = 0x8, scoped, tag = 'scoped memory for tpu_custom_call.1']
    %11 = vsyncpa [#allocation4], 0
    %s12 = scalar_lea.sflag [#allocation4], 1
    %13 = vsyncpa %s12, 0
    loop: start=0, step=1, limit=4
    $region2: #{tpu_custom_call.1} parent=1 // loop_pre_header
      _
    $region3: #{tpu_custom_call.1} parent=1 // loop_header
      %s15 = sphi 0, %s19
      %p16 = scmp.ge.s32.totalorder %s15, 4
      %s25 = sphi 0, %s27
      %s28 = sphi 0, %s25
      %s29 = sphi 0, %s28
      %s45 = sphi 0, %s29
      %s51 = sphi 0, %s53
      %s54 = sphi 0, %s51
      %s55 = sphi 0, %s54
      %s71 = sphi 0, %s55
      %s77 = sphi 0, %s79
      %s80 = sphi 0, %s77
      %s81 = sphi 0, %s80
      %s97 = sphi 0, %s81
      %s101 = sphi 0, %s101
      %s103 = sphi 0, %s101
      %s104 = sphi 0, %s103
      %s118 = sphi 0, %s104
      %s122 = sphi 0, %s122
      %s124 = sphi 0, %s122
      %s125 = sphi 0, %s124
      %s139 = sphi 0, %s125
      %s143 = sphi 0, %s143
      %s145 = sphi 0, %s143
      %s146 = sphi 0, %s145
      %s160 = sphi 0, %s146
      %s166 = sphi 0, %s168
      %s169 = sphi 0, %s166
      %s170 = sphi 0, %s169
      %s186 = sphi 0, %s170
    $region4: #{tpu_custom_call.1} parent=1 // loop_header_branch
      %18 = sbr.rel (%p16) target = $region8
    $region5: #{tpu_custom_call.1} parent=1 // loop_body
      %s20 = ssub.s32 %s15, 1
      %s21 = ssub.s32 %s15, 2
      %s22 = sadd.s32 %s15, 1
      %s23 = ssub.s32 %s15, %s22
      %p24 = scmp.eq.s32.totalorder %s23, 0
      %s26 = sadd.s32 %s25, 1
      %s27 = scalar_select %p24, %s25, %s26
      %p30 = pneg %p24
      %p31 = scmp.eq.s32.totalorder %s15, 1
      %p32 = por %p30, %p31
      %p33 = scmp.ne.s32.totalorder %s25, %s28
      %p34 = scmp.eq.s32.totalorder %s15, 0
      %p35 = por %p33, %p34
      %p36 = scmp.ne.s32.totalorder %s25, %s28
      %p37 = scmp.eq.s32.totalorder %s20, 1
      %p38 = por %p36, %p37
      %p39 = scmp.ne.s32.totalorder %s28, %s29
      %p40 = scmp.eq.s32.totalorder %s20, 0
      %p41 = por %p39, %p40
      %p42 = scmp.ne.s32.totalorder %s28, %s29
      %p43 = scmp.eq.s32.totalorder %s21, 1
      %p44 = por %p42, %p43
      %p46 = scmp.ne.s32.totalorder %s29, %s45
      %p47 = scmp.eq.s32.totalorder %s21, 0
      %p48 = por %p46, %p47
      %s49 = ssub.s32 %s15, %s22
      %p50 = scmp.eq.s32.totalorder %s49, 0
      %s52 = sadd.s32 %s51, 1
      %s53 = scalar_select %p50, %s51, %s52
      %p56 = pneg %p50
      %p57 = scmp.eq.s32.totalorder %s15, 1
      %p58 = por %p56, %p57
      %p59 = scmp.ne.s32.totalorder %s51, %s54
      %p60 = scmp.eq.s32.totalorder %s15, 0
      %p61 = por %p59, %p60
      %p62 = scmp.ne.s32.totalorder %s51, %s54
      %p63 = scmp.eq.s32.totalorder %s20, 1
      %p64 = por %p62, %p63
      %p65 = scmp.ne.s32.totalorder %s54, %s55
      %p66 = scmp.eq.s32.totalorder %s20, 0
      %p67 = por %p65, %p66
      %p68 = scmp.ne.s32.totalorder %s54, %s55
      %p69 = scmp.eq.s32.totalorder %s21, 1
      %p70 = por %p68, %p69
      %p72 = scmp.ne.s32.totalorder %s55, %s71
      %p73 = scmp.eq.s32.totalorder %s21, 0
      %p74 = por %p72, %p73
      %s75 = ssub.s32 %s15, %s22
      %p76 = scmp.eq.s32.totalorder %s75, 0
      %s78 = sadd.s32 %s77, 1
      %s79 = scalar_select %p76, %s77, %s78
      %p82 = pneg %p76
      %p83 = scmp.eq.s32.totalorder %s15, 1
      %p84 = por %p82, %p83
      %p85 = scmp.ne.s32.totalorder %s77, %s80
      %p86 = scmp.eq.s32.totalorder %s15, 0
      %p87 = por %p85, %p86
      %p88 = scmp.ne.s32.totalorder %s77, %s80
      %p89 = scmp.eq.s32.totalorder %s20, 1
      %p90 = por %p88, %p89
      %p91 = scmp.ne.s32.totalorder %s80, %s81
      %p92 = scmp.eq.s32.totalorder %s20, 0
      %p93 = por %p91, %p92
      %p94 = scmp.ne.s32.totalorder %s80, %s81
      %p95 = scmp.eq.s32.totalorder %s21, 1
      %p96 = por %p94, %p95
      %p98 = scmp.ne.s32.totalorder %s81, %s97
      %p99 = scmp.eq.s32.totalorder %s21, 0
      %p100 = por %p98, %p99
      %s102 = sadd.s32 %s101, 1
      %p105 = scmp.eq.s32.totalorder %s15, 1
      %p106 = scmp.ne.s32.totalorder %s101, %s103
      %p107 = scmp.eq.s32.totalorder %s15, 0
      %p108 = por %p106, %p107
      %p109 = scmp.ne.s32.totalorder %s101, %s103
      %p110 = scmp.eq.s32.totalorder %s20, 1
      %p111 = por %p109, %p110
      %p112 = scmp.ne.s32.totalorder %s103, %s104
      %p113 = scmp.eq.s32.totalorder %s20, 0
      %p114 = por %p112, %p113
      %p115 = scmp.ne.s32.totalorder %s103, %s104
      %p116 = scmp.eq.s32.totalorder %s21, 1
      %p117 = por %p115, %p116
      %p119 = scmp.ne.s32.totalorder %s104, %s118
      %p120 = scmp.eq.s32.totalorder %s21, 0
      %p121 = por %p119, %p120
      %s123 = sadd.s32 %s122, 1
      %p126 = scmp.eq.s32.totalorder %s15, 1
      %p127 = scmp.ne.s32.totalorder %s122, %s124
      %p128 = scmp.eq.s32.totalorder %s15, 0
      %p129 = por %p127, %p128
      %p130 = scmp.ne.s32.totalorder %s122, %s124
      %p131 = scmp.eq.s32.totalorder %s20, 1
      %p132 = por %p130, %p131
      %p133 = scmp.ne.s32.totalorder %s124, %s125
      %p134 = scmp.eq.s32.totalorder %s20, 0
      %p135 = por %p133, %p134
      %p136 = scmp.ne.s32.totalorder %s124, %s125
      %p137 = scmp.eq.s32.totalorder %s21, 1
      %p138 = por %p136, %p137
      %p140 = scmp.ne.s32.totalorder %s125, %s139
      %p141 = scmp.eq.s32.totalorder %s21, 0
      %p142 = por %p140, %p141
      %s144 = sadd.s32 %s143, 1
      %p147 = scmp.eq.s32.totalorder %s15, 1
      %p148 = scmp.ne.s32.totalorder %s143, %s145
      %p149 = scmp.eq.s32.totalorder %s15, 0
      %p150 = por %p148, %p149
      %p151 = scmp.ne.s32.totalorder %s143, %s145
      %p152 = scmp.eq.s32.totalorder %s20, 1
      %p153 = por %p151, %p152
      %p154 = scmp.ne.s32.totalorder %s145, %s146
      %p155 = scmp.eq.s32.totalorder %s20, 0
      %p156 = por %p154, %p155
      %p157 = scmp.ne.s32.totalorder %s145, %s146
      %p158 = scmp.eq.s32.totalorder %s21, 1
      %p159 = por %p157, %p158
      %p161 = scmp.ne.s32.totalorder %s146, %s160
      %p162 = scmp.eq.s32.totalorder %s21, 0
      %p163 = por %p161, %p162
      %s164 = ssub.s32 %s15, %s22
      %p165 = scmp.eq.s32.totalorder %s164, 0
      %s167 = sadd.s32 %s166, 1
      %s168 = scalar_select %p165, %s166, %s167
      %p171 = pneg %p165
      %p172 = scmp.eq.s32.totalorder %s15, 1
      %p173 = por %p171, %p172
      %p174 = scmp.ne.s32.totalorder %s166, %s169
      %p175 = scmp.eq.s32.totalorder %s15, 0
      %p176 = por %p174, %p175
      %p177 = scmp.ne.s32.totalorder %s166, %s169
      %p178 = scmp.eq.s32.totalorder %s20, 1
      %p179 = por %p177, %p178
      %p180 = scmp.ne.s32.totalorder %s169, %s170
      %p181 = scmp.eq.s32.totalorder %s20, 0
      %p182 = por %p180, %p181
      %p183 = scmp.ne.s32.totalorder %s169, %s170
      %p184 = scmp.eq.s32.totalorder %s21, 1
      %p185 = por %p183, %p184
      %p187 = scmp.ne.s32.totalorder %s170, %s186
      %p188 = scmp.eq.s32.totalorder %s21, 0
      %p189 = por %p187, %p188
      %p190 = scmp.le.s32.totalorder 1, %s15
      %p191 = scmp.lt.s32.totalorder %s15, 3
      %p192 = pnand %p190, %p191
      %p193 = pneg %p192
      // Predicated region
      $region9: #{tpu_custom_call.1} parent=5 // pred_check
        _
      $region10: #{tpu_custom_call.1} parent=5 // pred_check_branch
        %195 = sbr.rel (%p192) target = $region12
      $region11: #{tpu_custom_call.1} parent=5 // pred_region
        %s196 = ssub.s32 %s15, 1
        // Predicated region
        $region13: #{tpu_custom_call.1} parent=11 // pred_check
          %p197 = pneg %p114
        $region14: #{tpu_custom_call.1} parent=11 // pred_check_branch
          %199 = sbr.rel (%p197) target = $region16
        $region15: #{tpu_custom_call.1} parent=11 // pred_region
          _
        $region16: #{tpu_custom_call.1} parent=11 // pred_fallthru
          _
        // Predicated region
        $region17: #{tpu_custom_call.1} parent=11 // pred_check
          %p200 = pneg %p135
        $region18: #{tpu_custom_call.1} parent=11 // pred_check_branch
          %202 = sbr.rel (%p200) target = $region20
        $region19: #{tpu_custom_call.1} parent=11 // pred_region
          _
        $region20: #{tpu_custom_call.1} parent=11 // pred_fallthru
          _
        // Predicated region
        $region21: #{tpu_custom_call.1} parent=11 // pred_check
          %p203 = pneg %p156
        $region22: #{tpu_custom_call.1} parent=11 // pred_check_branch
          %205 = sbr.rel (%p203) target = $region24
        $region23: #{tpu_custom_call.1} parent=11 // pred_region
          _
        $region24: #{tpu_custom_call.1} parent=11 // pred_fallthru
          _
      $region12: #{tpu_custom_call.1} parent=5 // pred_fallthru
        _
      %p206 = scmp.lt.s32.totalorder %s15, 2
      // Predicated region
      $region25: #{tpu_custom_call.1} parent=5 // pred_check
        %p207 = pneg %p206
      $region26: #{tpu_custom_call.1} parent=5 // pred_check_branch
        %209 = sbr.rel (%p207) target = $region28
      $region27: #{tpu_custom_call.1} parent=5 // pred_region
        // Predicated region
        $region29: #{tpu_custom_call.1} parent=27 // pred_check
          %p210 = pneg %p35
        $region30: #{tpu_custom_call.1} parent=27 // pred_check_branch
          %212 = sbr.rel (%p210) target = $region32
        $region31: #{tpu_custom_call.1} parent=27 // pred_region
          %p213 = scmp.lt.s32.totalorder %s15, 1
          %s214 = scalar_select %p213, %s15, 1
          %s215 = smul.addr %s214, 2
          %s216 = smul.addr %s215, 8
          %s217 = scalar_lea.vmem %s0, %s216
        $region32: #{tpu_custom_call.1} parent=27 // pred_fallthru
          _
        // Predicated region
        $region33: #{tpu_custom_call.1} parent=27 // pred_check
          %p218 = pneg %p61
        $region34: #{tpu_custom_call.1} parent=27 // pred_check_branch
          %220 = sbr.rel (%p218) target = $region36
        $region35: #{tpu_custom_call.1} parent=27 // pred_region
          %p221 = scmp.lt.s32.totalorder %s15, 1
          %s222 = scalar_select %p221, %s15, 1
          %s223 = smul.addr %s222, 2
          %s224 = smul.addr %s223, 8
          %s225 = scalar_lea.vmem %s1, %s224
        $region36: #{tpu_custom_call.1} parent=27 // pred_fallthru
          _
        // Predicated region
        $region37: #{tpu_custom_call.1} parent=27 // pred_check
          %p226 = pneg %p87
        $region38: #{tpu_custom_call.1} parent=27 // pred_check_branch
          %228 = sbr.rel (%p226) target = $region40
        $region39: #{tpu_custom_call.1} parent=27 // pred_region
          %p229 = scmp.lt.s32.totalorder %s15, 1
          %s230 = scalar_select %p229, %s15, 1
          %s231 = scalar_lea.vmem %s2, %s230
        $region40: #{tpu_custom_call.1} parent=27 // pred_fallthru
          _
      $region28: #{tpu_custom_call.1} parent=5 // pred_fallthru
        _
      %p232 = scmp.le.s32.totalorder 1, %s15
      %p233 = scmp.lt.s32.totalorder %s15, 3
      %p234 = pnand %p232, %p233
      %p235 = pneg %p234
      // Predicated region
      $region41: #{tpu_custom_call.1} parent=5 // pred_check
        _
      $region42: #{tpu_custom_call.1} parent=5 // pred_check_branch
        %237 = sbr.rel (%p234) target = $region44
      $region43: #{tpu_custom_call.1} parent=5 // pred_region
        %s238 = ssub.s32 %s15, 1
        %p239 = scmp.lt.s32.totalorder %s20, 1
        %s240 = scalar_select %p239, %s20, 1
        %s241 = smul.addr %s240, 2
        %s242 = smul.addr %s241, 8
        %s243 = scalar_lea.vmem %s0, %s242
        %p244 = pneg %p41
        %p245 = pneg %p38
        %p246 = scmp.lt.s32.totalorder %s20, 1
        %s247 = scalar_select %p246, %s20, 1
        %s248 = smul.addr %s247, 2
        %s249 = smul.addr %s248, 8
        %s250 = scalar_lea.vmem %s1, %s249
        %p251 = pneg %p67
        %p252 = pneg %p64
        %p253 = scmp.lt.s32.totalorder %s20, 1
        %s254 = scalar_select %p253, %s20, 1
        %s255 = scalar_lea.vmem %s2, %s254
        %p256 = pneg %p93
        %p257 = pneg %p90
        %p258 = pneg %p114
        %p259 = pneg %p111
        %p260 = pneg %p135
        %p261 = pneg %p132
        %p262 = pneg %p156
        %p263 = pneg %p153
        %p264 = pneg %p182
        %p265 = pneg %p179
        %s266 = sand.u32 %s169, 1
        %s267 = scalar_lea.sflag [#allocation4], %s266
        %s268 = sand.u32 %s169, 1
        %s269 = smul.addr %s268, 16
        %s270 = scalar_lea.vmem [#allocation3], %s269
        %p271 = scmp.lt.s32.totalorder %s20, 1
        %s272 = scalar_select %p271, %s20, 1
        %s273 = smul.addr %s272, 2
        %s274 = smul.addr %s273, 8
        %s275 = scalar_lea.vmem %s0, %s274
        %p276 = scmp.lt.s32.totalorder %s20, 1
        %s277 = scalar_select %p276, %s20, 1
        %s278 = smul.addr %s277, 2
        %s279 = smul.addr %s278, 8
        %s280 = scalar_lea.vmem %s1, %s279
        %p281 = scmp.lt.s32.totalorder %s20, 1
        %s282 = scalar_select %p281, %s20, 1
        %s283 = scalar_lea.vmem %s2, %s282
        %v285 = vld [vmem:[%s275] sm:$0xff]
        %v286 = vld [vmem:[%s275 + $0x8] sm:$0xff]
        %v287 = vld [vmem:[%s280] sm:$0xff]
        %v288 = vld [vmem:[%s280 + $0x8] sm:$0xff]
        %290 = vset.pattern.permute.xlu0 0
        %291 = vperm.xlu0 %290, %v287
        %v292 = vpop.permute.xlu0 %291
        %295 = vset.pattern.permute.xlu0 0
        %296 = vperm.xlu0 %295, %v288
        %v297 = vpop.permute.xlu0 %296
        %v299 = vld [vmem:[%s283] sm:$0x1]
        %vm300 = vcmask 261120
        %301 = vst.msk [vmem:[#allocation2] sm:$0xff] %vm300, 0.0
        %302 = vst.msk [vmem:[#allocation2 + $0x8] sm:$0xff] %vm300, 0.0
        %303 = vst.msk [vmem:[#allocation2 + $0x10] sm:$0xff] %vm300, 0.0
        %304 = vst.msk [vmem:[#allocation2 + $0x18] sm:$0xff] %vm300, 0.0
        %v305 = vpack.c.bf16 %v286, %v285
        %v306 = vld [vmem:[%s3] sm:$0xf]
        %v307 = vld [vmem:[%s3 + $0x4] sm:$0xf]
        %v308 = vld [vmem:[%s4] sm:$0x1]
        %v309 = vlaneseq
        %v310 = vshrl.u32 %v309, 7
        %v311 = vsub.s32 0, %v310
        %v312 = vrot.slane %v308, %v311
        %v315 = vunpack.c.l.b16 %v306
        %v316 = vunpack.c.l.b16 %v307
        %v317 = vpack.c.b16 %v316, %v315
        %vm319 = vcmask 130048
        %v321 = vsel %vm319, %v305, 0
        %323 = vmatprep.subr.bf16.mxu0 0
        %324 = vmatpush1.bf16.msra.mxu0 %v317
        %325 = vmatprep.subr.bf16.mxu0 0
        %326 = vmatpush1.bf16.msra.mxu0 0
        %327 = vmatprep.subr.bf16.mxu0 0
        %328 = vmatpush1.bf16.msra.mxu0 0
        %329 = vmatprep.subr.bf16.mxu0 0
        %330 = vmatpush1.bf16.msra.mxu0 0
        %331 = vmatprep.subr.bf16.mxu0 0
        %332 = vmatpush1.bf16.msra.mxu0 0
        %333 = vmatprep.subr.bf16.mxu0 0
        %334 = vmatpush1.bf16.msra.mxu0 0
        %335 = vmatprep.subr.bf16.mxu0 0
        %336 = vmatpush1.bf16.msra.mxu0 0
        %337 = vmatprep.subr.bf16.mxu0 0
        %338 = vmatpush1.bf16.msra.mxu0 0
        %339 = vmatprep.subr.bf16.mxu0 0
        %340 = vmatpush1.bf16.msra.mxu0 0
        %341 = vmatprep.subr.bf16.mxu0 0
        %342 = vmatpush1.bf16.msra.mxu0 0
        %343 = vmatprep.subr.bf16.mxu0 0
        %344 = vmatpush1.bf16.msra.mxu0 0
        %345 = vmatprep.subr.bf16.mxu0 0
        %346 = vmatpush1.bf16.msra.mxu0 0
        %347 = vmatprep.subr.bf16.mxu0 0
        %348 = vmatpush1.bf16.msra.mxu0 0
        %349 = vmatprep.subr.bf16.mxu0 0
        %350 = vmatpush1.bf16.msra.mxu0 0
        %351 = vmatprep.subr.bf16.mxu0 0
        %352 = vmatpush1.bf16.msra.mxu0 0
        %353 = vmatprep.subr.bf16.mxu0 0
        %354 = vmatpush1.bf16.msra.mxu0 0
        %355 = vmatprep.mubr.bf16.mxu0 0
        %356 = vmatmul.mubr.bf16.gmra.mrb[0].mxu0 %v321
        %v357 = vpop.f32.mrb[0].mxu0
        %v358 = vadd.f32 %v312, %v357
        %v359 = vpop.f32.mrb[0].mxu0
        %v360 = vpop.f32.mrb[0].mxu0
        %v361 = vadd.f32 %v312, %v360
        %v362 = vpop.f32.mrb[0].mxu0
        %363 = vdwg.mxu0
        %v364 = vmul.f32 %v358, %v292
        %v365 = vmul.f32 %v361, %v297
        %366 = vst.msk [vmem:[#allocation2 + $0x8] sm:$0xff] %vm300, %v364
        %367 = vst.msk [vmem:[#allocation2 + $0x10] sm:$0xff] %vm300, %v365
        %v368 = vld [vmem:[#allocation2 + $0x7] sm:$0xff]
        %v369 = vld [vmem:[#allocation2 + $0xf] sm:$0xff]
        %v370 = vld [vmem:[#allocation2 + $0x8] sm:$0xff]
        %v371 = vld [vmem:[#allocation2 + $0x10] sm:$0xff]
        %v372 = vld [vmem:[#allocation2 + $0x9] sm:$0xff]
        %v373 = vld [vmem:[#allocation2 + $0x11] sm:$0xff]
        %376 = vrot.lane.b32.xlu0 %v370, 32
        %v377 = vpop.permute.xlu0 %376
        %378 = vrot.lane.b32.xlu0 %v371, 32
        %v379 = vpop.permute.xlu0 %378
        %384 = vrot.lane.b32.xlu0 %v372, 64
        %v385 = vpop.permute.xlu0 %384
        %386 = vrot.lane.b32.xlu0 %v373, 64
        %v387 = vpop.permute.xlu0 %386
        %v390 = vsel %vm300, %v368, %v377
        %v391 = vsel %vm300, %v369, %v379
        %vm392 = vcmask 523264
        %v393 = vsel %vm392, %v390, %v385
        %v394 = vsel %vm392, %v391, %v387
        %v395 = vpack.c.bf16 %v394, %v393
        %v396 = vld [vmem:[%s3 + $0x8] sm:$0xf]
        %v397 = vld [vmem:[%s3 + $0xc] sm:$0xf]
        %v398 = vld [vmem:[%s3 + $0x10] sm:$0xf]
        %v399 = vld [vmem:[%s3 + $0x14] sm:$0xf]
        %v400 = vld [vmem:[%s3 + $0x18] sm:$0xf]
        %v401 = vld [vmem:[%s3 + $0x1c] sm:$0xf]
        %v402 = vld [vmem:[%s3 + $0x20] sm:$0xf]
        %v403 = vld [vmem:[%s3 + $0x24] sm:$0xf]
        %v404 = vld [vmem:[%s3 + $0x28] sm:$0xf]
        %v405 = vld [vmem:[%s3 + $0x2c] sm:$0xf]
        %v406 = vld [vmem:[%s3 + $0x30] sm:$0xf]
        %v407 = vld [vmem:[%s3 + $0x34] sm:$0xf]
        %v408 = vld [vmem:[%s4 + $0x1] sm:$0x1]
        %v409 = vlaneseq
        %v410 = vshrl.u32 %v409, 7
        %v411 = vsub.s32 0, %v410
        %v412 = vrot.slane %v408, %v411
        %v425 = vunpack.c.l.b16 %v396
        %v426 = vunpack.c.l.b16 %v397
        %v427 = vunpack.c.l.b16 %v398
        %v428 = vunpack.c.l.b16 %v399
        %v429 = vunpack.c.l.b16 %v400
        %v430 = vunpack.c.l.b16 %v401
        %v431 = vunpack.c.l.b16 %v402
        %v432 = vunpack.c.l.b16 %v403
        %v433 = vunpack.c.l.b16 %v404
        %v434 = vunpack.c.l.b16 %v405
        %v435 = vunpack.c.l.b16 %v406
        %v436 = vunpack.c.l.b16 %v407
        %v437 = vpack.c.b16 %v426, %v425
        %v438 = vpack.c.b16 %v428, %v427
        %v439 = vpack.c.b16 %v430, %v429
        %v440 = vpack.c.b16 %v432, %v431
        %v441 = vpack.c.b16 %v434, %v433
        %v442 = vpack.c.b16 %v436, %v435
        %vm449 = vcmask 785408
        %v451 = vsel %vm449, %v395, 0
        %453 = vmatprep.subr.bf16.mxu0 0
        %454 = vmatpush1.bf16.msra.mxu0 %v437
        %455 = vmatprep.subr.bf16.mxu0 0
        %456 = vmatpush1.bf16.msra.mxu0 %v438
        %457 = vmatprep.subr.bf16.mxu0 0
        %458 = vmatpush1.bf16.msra.mxu0 %v439
        %459 = vmatprep.subr.bf16.mxu0 0
        %460 = vmatpush1.bf16.msra.mxu0 %v440
        %461 = vmatprep.subr.bf16.mxu0 0
        %462 = vmatpush1.bf16.msra.mxu0 %v441
        %463 = vmatprep.subr.bf16.mxu0 0
        %464 = vmatpush1.bf16.msra.mxu0 %v442
        %465 = vmatprep.subr.bf16.mxu0 0
        %466 = vmatpush1.bf16.msra.mxu0 0
        %467 = vmatprep.subr.bf16.mxu0 0
        %468 = vmatpush1.bf16.msra.mxu0 0
        %469 = vmatprep.subr.bf16.mxu0 0
        %470 = vmatpush1.bf16.msra.mxu0 0
        %471 = vmatprep.subr.bf16.mxu0 0
        %472 = vmatpush1.bf16.msra.mxu0 0
        %473 = vmatprep.subr.bf16.mxu0 0
        %474 = vmatpush1.bf16.msra.mxu0 0
        %475 = vmatprep.subr.bf16.mxu0 0
        %476 = vmatpush1.bf16.msra.mxu0 0
        %477 = vmatprep.subr.bf16.mxu0 0
        %478 = vmatpush1.bf16.msra.mxu0 0
        %479 = vmatprep.subr.bf16.mxu0 0
        %480 = vmatpush1.bf16.msra.mxu0 0
        %481 = vmatprep.subr.bf16.mxu0 0
        %482 = vmatpush1.bf16.msra.mxu0 0
        %483 = vmatprep.subr.bf16.mxu0 0
        %484 = vmatpush1.bf16.msra.mxu0 0
        %485 = vmatprep.mubr.bf16.mxu0 0
        %486 = vmatmul.mubr.bf16.gmra.mrb[0].mxu0 %v451
        %v487 = vpop.f32.mrb[0].mxu0
        %v488 = vadd.f32 %v412, %v487
        %v489 = vpop.f32.mrb[0].mxu0
        %v490 = vpop.f32.mrb[0].mxu0
        %v491 = vadd.f32 %v412, %v490
        %v492 = vpop.f32.mrb[0].mxu0
        %493 = vdwg.mxu0
        %v494 = vld [vmem:[%s3 + $0x98] sm:$0xf]
        %v495 = vld [vmem:[%s3 + $0x9c] sm:$0xf]
        %v496 = vld [vmem:[%s3 + $0xa0] sm:$0xf]
        %v497 = vld [vmem:[%s3 + $0xa4] sm:$0xf]
        %v498 = vld [vmem:[%s3 + $0xa8] sm:$0xf]
        %v499 = vld [vmem:[%s3 + $0xac] sm:$0xf]
        %v500 = vld [vmem:[%s3 + $0xb0] sm:$0xf]
        %v501 = vld [vmem:[%s3 + $0xb4] sm:$0xf]
        %v502 = vld [vmem:[%s3 + $0xb8] sm:$0xf]
        %v503 = vld [vmem:[%s3 + $0xbc] sm:$0xf]
        %v504 = vld [vmem:[%s3 + $0xc0] sm:$0xf]
        %v505 = vld [vmem:[%s3 + $0xc4] sm:$0xf]
        %v506 = vld [vmem:[%s4 + $0x4] sm:$0x1]
        %v507 = vlaneseq
        %v508 = vshrl.u32 %v507, 7
        %v509 = vsub.s32 0, %v508
        %v510 = vrot.slane %v506, %v509
        %v523 = vunpack.c.l.b16 %v494
        %v524 = vunpack.c.l.b16 %v495
        %v525 = vunpack.c.l.b16 %v496
        %v526 = vunpack.c.l.b16 %v497
        %v527 = vunpack.c.l.b16 %v498
        %v528 = vunpack.c.l.b16 %v499
        %v529 = vunpack.c.l.b16 %v500
        %v530 = vunpack.c.l.b16 %v501
        %v531 = vunpack.c.l.b16 %v502
        %v532 = vunpack.c.l.b16 %v503
        %v533 = vunpack.c.l.b16 %v504
        %v534 = vunpack.c.l.b16 %v505
        %v535 = vpack.c.b16 %v524, %v523
        %v536 = vpack.c.b16 %v526, %v525
        %v537 = vpack.c.b16 %v528, %v527
        %v538 = vpack.c.b16 %v530, %v529
        %v539 = vpack.c.b16 %v532, %v531
        %v540 = vpack.c.b16 %v534, %v533
        %547 = vmatprep.subr.bf16.mxu0 0
        %548 = vmatpush1.bf16.msra.mxu0 %v535
        %549 = vmatprep.subr.bf16.mxu0 0
        %550 = vmatpush1.bf16.msra.mxu0 %v536
        %551 = vmatprep.subr.bf16.mxu0 0
        %552 = vmatpush1.bf16.msra.mxu0 %v537
        %553 = vmatprep.subr.bf16.mxu0 0
        %554 = vmatpush1.bf16.msra.mxu0 %v538
        %555 = vmatprep.subr.bf16.mxu0 0
        %556 = vmatpush1.bf16.msra.mxu0 %v539
        %557 = vmatprep.subr.bf16.mxu0 0
        %558 = vmatpush1.bf16.msra.mxu0 %v540
        %559 = vmatprep.subr.bf16.mxu0 0
        %560 = vmatpush1.bf16.msra.mxu0 0
        %561 = vmatprep.subr.bf16.mxu0 0
        %562 = vmatpush1.bf16.msra.mxu0 0
        %563 = vmatprep.subr.bf16.mxu0 0
        %564 = vmatpush1.bf16.msra.mxu0 0
        %565 = vmatprep.subr.bf16.mxu0 0
        %566 = vmatpush1.bf16.msra.mxu0 0
        %567 = vmatprep.subr.bf16.mxu0 0
        %568 = vmatpush1.bf16.msra.mxu0 0
        %569 = vmatprep.subr.bf16.mxu0 0
        %570 = vmatpush1.bf16.msra.mxu0 0
        %571 = vmatprep.subr.bf16.mxu0 0
        %572 = vmatpush1.bf16.msra.mxu0 0
        %573 = vmatprep.subr.bf16.mxu0 0
        %574 = vmatpush1.bf16.msra.mxu0 0
        %575 = vmatprep.subr.bf16.mxu0 0
        %576 = vmatpush1.bf16.msra.mxu0 0
        %577 = vmatprep.subr.bf16.mxu0 0
        %578 = vmatpush1.bf16.msra.mxu0 0
        %579 = vmatprep.mubr.bf16.mxu0 0
        %580 = vmatmul.mubr.bf16.gmra.mrb[0].mxu0 %v451
        %v581 = vpop.f32.mrb[0].mxu0
        %v582 = vadd.f32 %v510, %v581
        %v583 = vpop.f32.mrb[0].mxu0
        %v584 = vpop.f32.mrb[0].mxu0
        %v585 = vadd.f32 %v510, %v584
        %v586 = vpop.f32.mrb[0].mxu0
        %587 = vdwg.mxu0
        %v588 = vtanh.pop %v488
        %v589 = vtanh.pop %v491
        %v590 = vxor.u32 %v582, 2147483648
        %v591 = vxor.u32 %v585, 2147483648
        %v592 = vmul.f32 %v590, 1.442695
        %v593 = vpow.pop %v592
        %v594 = vmul.f32 %v591, 1.442695
        %v595 = vpow.pop %v594
        %v596 = vadd.f32 %v593, 1.0
        %v597 = vadd.f32 %v595, 1.0
        %v598 = vrcp.pop %v596
        %v599 = vmul.f32 1.0, %v598
        %v600 = vrcp.pop %v597
        %v601 = vmul.f32 1.0, %v600
        %v602 = vmul.f32 %v588, %v599
        %v603 = vmul.f32 %v589, %v601
        %v604 = vpack.c.bf16 %v603, %v602
        %v605 = vld [vmem:[%s3 + $0x128] sm:$0xf]
        %v606 = vld [vmem:[%s3 + $0x12c] sm:$0xf]
        %v607 = vld [vmem:[%s3 + $0x130] sm:$0xf]
        %v608 = vld [vmem:[%s3 + $0x134] sm:$0xf]
        %v609 = vld [vmem:[%s4 + $0x7] sm:$0x1]
        %v610 = vlaneseq
        %v611 = vshrl.u32 %v610, 7
        %v612 = vsub.s32 0, %v611
        %v613 = vrot.slane %v609, %v612
        %v618 = vunpack.c.l.b16 %v605
        %v619 = vunpack.c.l.b16 %v606
        %v620 = vunpack.c.l.b16 %v607
        %v621 = vunpack.c.l.b16 %v608
        %v622 = vpack.c.b16 %v619, %v618
        %v623 = vpack.c.b16 %v621, %v620
        %v627 = vsel %vm300, %v604, 0
        %629 = vmatprep.subr.bf16.mxu0 0
        %630 = vmatpush1.bf16.msra.mxu0 %v622
        %631 = vmatprep.subr.bf16.mxu0 0
        %632 = vmatpush1.bf16.msra.mxu0 %v623
        %633 = vmatprep.subr.bf16.mxu0 0
        %634 = vmatpush1.bf16.msra.mxu0 0
        %635 = vmatprep.subr.bf16.mxu0 0
        %636 = vmatpush1.bf16.msra.mxu0 0
        %637 = vmatprep.subr.bf16.mxu0 0
        %638 = vmatpush1.bf16.msra.mxu0 0
        %639 = vmatprep.subr.bf16.mxu0 0
        %640 = vmatpush1.bf16.msra.mxu0 0
        %641 = vmatprep.subr.bf16.mxu0 0
        %642 = vmatpush1.bf16.msra.mxu0 0
        %643 = vmatprep.subr.bf16.mxu0 0
        %644 = vmatpush1.bf16.msra.mxu0 0
        %645 = vmatprep.subr.bf16.mxu0 0
        %646 = vmatpush1.bf16.msra.mxu0 0
        %647 = vmatprep.subr.bf16.mxu0 0
        %648 = vmatpush1.bf16.msra.mxu0 0
        %649 = vmatprep.subr.bf16.mxu0 0
        %650 = vmatpush1.bf16.msra.mxu0 0
        %651 = vmatprep.subr.bf16.mxu0 0
        %652 = vmatpush1.bf16.msra.mxu0 0
        %653 = vmatprep.subr.bf16.mxu0 0
        %654 = vmatpush1.bf16.msra.mxu0 0
        %655 = vmatprep.subr.bf16.mxu0 0
        %656 = vmatpush1.bf16.msra.mxu0 0
        %657 = vmatprep.subr.bf16.mxu0 0
        %658 = vmatpush1.bf16.msra.mxu0 0
        %659 = vmatprep.subr.bf16.mxu0 0
        %660 = vmatpush1.bf16.msra.mxu0 0
        %661 = vmatprep.mubr.bf16.mxu0 0
        %662 = vmatmul.mubr.bf16.gmra.mrb[0].mxu0 %v627
        %v663 = vpop.f32.mrb[0].mxu0
        %v664 = vadd.f32 %v613, %v663
        %v665 = vpop.f32.mrb[0].mxu0
        %v666 = vpop.f32.mrb[0].mxu0
        %v667 = vadd.f32 %v613, %v666
        %v668 = vpop.f32.mrb[0].mxu0
        %669 = vdwg.mxu0
        %v670 = vadd.f32 %v364, %v664
        %v671 = vadd.f32 %v365, %v667
        %v672 = vmul.f32 %v670, %v292
        %v673 = vmul.f32 %v671, %v297
        %v674 = vld [vmem:[%s3 + $0x148] sm:$0xf]
        %v675 = vld [vmem:[%s3 + $0x14c] sm:$0xf]
        %v676 = vld [vmem:[%s3 + $0x150] sm:$0xf]
        %v677 = vld [vmem:[%s3 + $0x154] sm:$0xf]
        %v678 = vld [vmem:[%s4 + $0x9] sm:$0x1]
        %v679 = vlaneseq
        %v680 = vshrl.u32 %v679, 7
        %v681 = vsub.s32 0, %v680
        %v682 = vrot.slane %v678, %v681
        %v687 = vunpack.c.l.b16 %v674
        %v688 = vunpack.c.l.b16 %v675
        %v689 = vunpack.c.l.b16 %v676
        %v690 = vunpack.c.l.b16 %v677
        %v691 = vpack.c.b16 %v688, %v687
        %v692 = vpack.c.b16 %v690, %v689
        %695 = vmatprep.subr.bf16.mxu0 0
        %696 = vmatpush1.bf16.msra.mxu0 %v691
        %697 = vmatprep.subr.bf16.mxu0 0
        %698 = vmatpush1.bf16.msra.mxu0 %v692
        %699 = vmatprep.subr.bf16.mxu0 0
        %700 = vmatpush1.bf16.msra.mxu0 0
        %701 = vmatprep.subr.bf16.mxu0 0
        %702 = vmatpush1.bf16.msra.mxu0 0
        %703 = vmatprep.subr.bf16.mxu0 0
        %704 = vmatpush1.bf16.msra.mxu0 0
        %705 = vmatprep.subr.bf16.mxu0 0
        %706 = vmatpush1.bf16.msra.mxu0 0
        %707 = vmatprep.subr.bf16.mxu0 0
        %708 = vmatpush1.bf16.msra.mxu0 0
        %709 = vmatprep.subr.bf16.mxu0 0
        %710 = vmatpush1.bf16.msra.mxu0 0
        %711 = vmatprep.subr.bf16.mxu0 0
        %712 = vmatpush1.bf16.msra.mxu0 0
        %713 = vmatprep.subr.bf16.mxu0 0
        %714 = vmatpush1.bf16.msra.mxu0 0
        %715 = vmatprep.subr.bf16.mxu0 0
        %716 = vmatpush1.bf16.msra.mxu0 0
        %717 = vmatprep.subr.bf16.mxu0 0
        %718 = vmatpush1.bf16.msra.mxu0 0
        %719 = vmatprep.subr.bf16.mxu0 0
        %720 = vmatpush1.bf16.msra.mxu0 0
        %721 = vmatprep.subr.bf16.mxu0 0
        %722 = vmatpush1.bf16.msra.mxu0 0
        %723 = vmatprep.subr.bf16.mxu0 0
        %724 = vmatpush1.bf16.msra.mxu0 0
        %725 = vmatprep.subr.bf16.mxu0 0
        %726 = vmatpush1.bf16.msra.mxu0 0
        %727 = vmatprep.mubr.bf16.mxu0 0
        %728 = vmatmul.mubr.bf16.gmra.mrb[0].mxu0 %v627
        %v729 = vpop.f32.mrb[0].mxu0
        %v730 = vadd.f32 %v682, %v729
        %v731 = vpop.f32.mrb[0].mxu0
        %v732 = vpop.f32.mrb[0].mxu0
        %v733 = vadd.f32 %v682, %v732
        %v734 = vpop.f32.mrb[0].mxu0
        %735 = vdwg.mxu0
        %v736 = vadd.f32 %v730, 0.0
        %v737 = vadd.f32 %v733, 0.0
        %738 = vst.msk [vmem:[#allocation2 + $0x8] sm:$0xff] %vm300, %v672
        %739 = vst.msk [vmem:[#allocation2 + $0x10] sm:$0xff] %vm300, %v673
        %v740 = vld [vmem:[#allocation2 + $0x6] sm:$0xff]
        %v741 = vld [vmem:[#allocation2 + $0xe] sm:$0xff]
        %v742 = vld [vmem:[#allocation2 + $0x8] sm:$0xff]
        %v743 = vld [vmem:[#allocation2 + $0x10] sm:$0xff]
        %v744 = vld [vmem:[#allocation2 + $0xa] sm:$0xff]
        %v745 = vld [vmem:[#allocation2 + $0x12] sm:$0xff]
        %748 = vrot.lane.b32.xlu0 %v742, 32
        %v749 = vpop.permute.xlu0 %748
        %750 = vrot.lane.b32.xlu0 %v743, 32
        %v751 = vpop.permute.xlu0 %750
        %756 = vrot.lane.b32.xlu0 %v744, 64
        %v757 = vpop.permute.xlu0 %756
        %758 = vrot.lane.b32.xlu0 %v745, 64
        %v759 = vpop.permute.xlu0 %758
        %v762 = vsel %vm300, %v740, %v749
        %v763 = vsel %vm300, %v741, %v751
        %v764 = vsel %vm392, %v762, %v757
        %v765 = vsel %vm392, %v763, %v759
        %v766 = vpack.c.bf16 %v765, %v764
        %v767 = vld [vmem:[%s3 + $0x38] sm:$0xf]
        %v768 = vld [vmem:[%s3 + $0x3c] sm:$0xf]
        %v769 = vld [vmem:[%s3 + $0x40] sm:$0xf]
        %v770 = vld [vmem:[%s3 + $0x44] sm:$0xf]
        %v771 = vld [vmem:[%s3 + $0x48] sm:$0xf]
        %v772 = vld [vmem:[%s3 + $0x4c] sm:$0xf]
        %v773 = vld [vmem:[%s3 + $0x50] sm:$0xf]
        %v774 = vld [vmem:[%s3 + $0x54] sm:$0xf]
        %v775 = vld [vmem:[%s3 + $0x58] sm:$0xf]
        %v776 = vld [vmem:[%s3 + $0x5c] sm:$0xf]
        %v777 = vld [vmem:[%s3 + $0x60] sm:$0xf]
        %v778 = vld [vmem:[%s3 + $0x64] sm:$0xf]
        %v779 = vld [vmem:[%s4 + $0x2] sm:$0x1]
        %v780 = vlaneseq
        %v781 = vshrl.u32 %v780, 7
        %v782 = vsub.s32 0, %v781
        %v783 = vrot.slane %v779, %v782
        %v796 = vunpack.c.l.b16 %v767
        %v797 = vunpack.c.l.b16 %v768
        %v798 = vunpack.c.l.b16 %v769
        %v799 = vunpack.c.l.b16 %v770
        %v800 = vunpack.c.l.b16 %v771
        %v801 = vunpack.c.l.b16 %v772
        %v802 = vunpack.c.l.b16 %v773
        %v803 = vunpack.c.l.b16 %v774
        %v804 = vunpack.c.l.b16 %v775
        %v805 = vunpack.c.l.b16 %v776
        %v806 = vunpack.c.l.b16 %v777
        %v807 = vunpack.c.l.b16 %v778
        %v808 = vpack.c.b16 %v797, %v796
        %v809 = vpack.c.b16 %v799, %v798
        %v810 = vpack.c.b16 %v801, %v800
        %v811 = vpack.c.b16 %v803, %v802
        %v812 = vpack.c.b16 %v805, %v804
        %v813 = vpack.c.b16 %v807, %v806
        %v821 = vsel %vm449, %v766, 0
        %823 = vmatprep.subr.bf16.mxu0 0
        %824 = vmatpush1.bf16.msra.mxu0 %v808
        %825 = vmatprep.subr.bf16.mxu0 0
        %826 = vmatpush1.bf16.msra.mxu0 %v809
        %827 = vmatprep.subr.bf16.mxu0 0
        %828 = vmatpush1.bf16.msra.mxu0 %v810
        %829 = vmatprep.subr.bf16.mxu0 0
        %830 = vmatpush1.bf16.msra.mxu0 %v811
        %831 = vmatprep.subr.bf16.mxu0 0
        %832 = vmatpush1.bf16.msra.mxu0 %v812
        %833 = vmatprep.subr.bf16.mxu0 0
        %834 = vmatpush1.bf16.msra.mxu0 %v813
        %835 = vmatprep.subr.bf16.mxu0 0
        %836 = vmatpush1.bf16.msra.mxu0 0
        %837 = vmatprep.subr.bf16.mxu0 0
        %838 = vmatpush1.bf16.msra.mxu0 0
        %839 = vmatprep.subr.bf16.mxu0 0
        %840 = vmatpush1.bf16.msra.mxu0 0
        %841 = vmatprep.subr.bf16.mxu0 0
        %842 = vmatpush1.bf16.msra.mxu0 0
        %843 = vmatprep.subr.bf16.mxu0 0
        %844 = vmatpush1.bf16.msra.mxu0 0
        %845 = vmatprep.subr.bf16.mxu0 0
        %846 = vmatpush1.bf16.msra.mxu0 0
        %847 = vmatprep.subr.bf16.mxu0 0
        %848 = vmatpush1.bf16.msra.mxu0 0
        %849 = vmatprep.subr.bf16.mxu0 0
        %850 = vmatpush1.bf16.msra.mxu0 0
        %851 = vmatprep.subr.bf16.mxu0 0
        %852 = vmatpush1.bf16.msra.mxu0 0
        %853 = vmatprep.subr.bf16.mxu0 0
        %854 = vmatpush1.bf16.msra.mxu0 0
        %855 = vmatprep.mubr.bf16.mxu0 0
        %856 = vmatmul.mubr.bf16.gmra.mrb[0].mxu0 %v821
        %v857 = vpop.f32.mrb[0].mxu0
        %v858 = vadd.f32 %v783, %v857
        %v859 = vpop.f32.mrb[0].mxu0
        %v860 = vpop.f32.mrb[0].mxu0
        %v861 = vadd.f32 %v783, %v860
        %v862 = vpop.f32.mrb[0].mxu0
        %863 = vdwg.mxu0
        %v864 = vld [vmem:[%s3 + $0xc8] sm:$0xf]
        %v865 = vld [vmem:[%s3 + $0xcc] sm:$0xf]
        %v866 = vld [vmem:[%s3 + $0xd0] sm:$0xf]
        %v867 = vld [vmem:[%s3 + $0xd4] sm:$0xf]
        %v868 = vld [vmem:[%s3 + $0xd8] sm:$0xf]
        %v869 = vld [vmem:[%s3 + $0xdc] sm:$0xf]
        %v870 = vld [vmem:[%s3 + $0xe0] sm:$0xf]
        %v871 = vld [vmem:[%s3 + $0xe4] sm:$0xf]
        %v872 = vld [vmem:[%s3 + $0xe8] sm:$0xf]
        %v873 = vld [vmem:[%s3 + $0xec] sm:$0xf]
        %v874 = vld [vmem:[%s3 + $0xf0] sm:$0xf]
        %v875 = vld [vmem:[%s3 + $0xf4] sm:$0xf]
        %v876 = vld [vmem:[%s4 + $0x5] sm:$0x1]
        %v877 = vlaneseq
        %v878 = vshrl.u32 %v877, 7
        %v879 = vsub.s32 0, %v878
        %v880 = vrot.slane %v876, %v879
        %v893 = vunpack.c.l.b16 %v864
        %v894 = vunpack.c.l.b16 %v865
        %v895 = vunpack.c.l.b16 %v866
        %v896 = vunpack.c.l.b16 %v867
        %v897 = vunpack.c.l.b16 %v868
        %v898 = vunpack.c.l.b16 %v869
        %v899 = vunpack.c.l.b16 %v870
        %v900 = vunpack.c.l.b16 %v871
        %v901 = vunpack.c.l.b16 %v872
        %v902 = vunpack.c.l.b16 %v873
        %v903 = vunpack.c.l.b16 %v874
        %v904 = vunpack.c.l.b16 %v875
        %v905 = vpack.c.b16 %v894, %v893
        %v906 = vpack.c.b16 %v896, %v895
        %v907 = vpack.c.b16 %v898, %v897
        %v908 = vpack.c.b16 %v900, %v899
        %v909 = vpack.c.b16 %v902, %v901
        %v910 = vpack.c.b16 %v904, %v903
        %917 = vmatprep.subr.bf16.mxu0 0
        %918 = vmatpush1.bf16.msra.mxu0 %v905
        %919 = vmatprep.subr.bf16.mxu0 0
        %920 = vmatpush1.bf16.msra.mxu0 %v906
        %921 = vmatprep.subr.bf16.mxu0 0
        %922 = vmatpush1.bf16.msra.mxu0 %v907
        %923 = vmatprep.subr.bf16.mxu0 0
        %924 = vmatpush1.bf16.msra.mxu0 %v908
        %925 = vmatprep.subr.bf16.mxu0 0
        %926 = vmatpush1.bf16.msra.mxu0 %v909
        %927 = vmatprep.subr.bf16.mxu0 0
        %928 = vmatpush1.bf16.msra.mxu0 %v910
        %929 = vmatprep.subr.bf16.mxu0 0
        %930 = vmatpush1.bf16.msra.mxu0 0
        %931 = vmatprep.subr.bf16.mxu0 0
        %932 = vmatpush1.bf16.msra.mxu0 0
        %933 = vmatprep.subr.bf16.mxu0 0
        %934 = vmatpush1.bf16.msra.mxu0 0
        %935 = vmatprep.subr.bf16.mxu0 0
        %936 = vmatpush1.bf16.msra.mxu0 0
        %937 = vmatprep.subr.bf16.mxu0 0
        %938 = vmatpush1.bf16.msra.mxu0 0
        %939 = vmatprep.subr.bf16.mxu0 0
        %940 = vmatpush1.bf16.msra.mxu0 0
        %941 = vmatprep.subr.bf16.mxu0 0
        %942 = vmatpush1.bf16.msra.mxu0 0
        %943 = vmatprep.subr.bf16.mxu0 0
        %944 = vmatpush1.bf16.msra.mxu0 0
        %945 = vmatprep.subr.bf16.mxu0 0
        %946 = vmatpush1.bf16.msra.mxu0 0
        %947 = vmatprep.subr.bf16.mxu0 0
        %948 = vmatpush1.bf16.msra.mxu0 0
        %949 = vmatprep.mubr.bf16.mxu0 0
        %950 = vmatmul.mubr.bf16.gmra.mrb[0].mxu0 %v821
        %v951 = vpop.f32.mrb[0].mxu0
        %v952 = vadd.f32 %v880, %v951
        %v953 = vpop.f32.mrb[0].mxu0
        %v954 = vpop.f32.mrb[0].mxu0
        %v955 = vadd.f32 %v880, %v954
        %v956 = vpop.f32.mrb[0].mxu0
        %957 = vdwg.mxu0
        %v958 = vtanh.pop %v858
        %v959 = vtanh.pop %v861
        %v960 = vxor.u32 %v952, 2147483648
        %v961 = vxor.u32 %v955, 2147483648
        %v962 = vmul.f32 %v960, 1.442695
        %v963 = vpow.pop %v962
        %v964 = vmul.f32 %v961, 1.442695
        %v965 = vpow.pop %v964
        %v966 = vadd.f32 %v963, 1.0
        %v967 = vadd.f32 %v965, 1.0
        %v968 = vrcp.pop %v966
        %v969 = vmul.f32 1.0, %v968
        %v970 = vrcp.pop %v967
        %v971 = vmul.f32 1.0, %v970
        %v972 = vmul.f32 %v958, %v969
        %v973 = vmul.f32 %v959, %v971
        %v974 = vpack.c.bf16 %v973, %v972
        %v975 = vld [vmem:[%s3 + $0x138] sm:$0xf]
        %v976 = vld [vmem:[%s3 + $0x13c] sm:$0xf]
        %v977 = vld [vmem:[%s3 + $0x140] sm:$0xf]
        %v978 = vld [vmem:[%s3 + $0x144] sm:$0xf]
        %v979 = vld [vmem:[%s4 + $0x8] sm:$0x1]
        %v980 = vlaneseq
        %v981 = vshrl.u32 %v980, 7
        %v982 = vsub.s32 0, %v981
        %v983 = vrot.slane %v979, %v982
        %v988 = vunpack.c.l.b16 %v975
        %v989 = vunpack.c.l.b16 %v976
        %v990 = vunpack.c.l.b16 %v977
        %v991 = vunpack.c.l.b16 %v978
        %v992 = vpack.c.b16 %v989, %v988
        %v993 = vpack.c.b16 %v991, %v990
        %v997 = vsel %vm300, %v974, 0
        %999 = vmatprep.subr.bf16.mxu0 0
        %1000 = vmatpush1.bf16.msra.mxu0 %v992
        %1001 = vmatprep.subr.bf16.mxu0 0
        %1002 = vmatpush1.bf16.msra.mxu0 %v993
        %1003 = vmatprep.subr.bf16.mxu0 0
        %1004 = vmatpush1.bf16.msra.mxu0 0
        %1005 = vmatprep.subr.bf16.mxu0 0
        %1006 = vmatpush1.bf16.msra.mxu0 0
        %1007 = vmatprep.subr.bf16.mxu0 0
        %1008 = vmatpush1.bf16.msra.mxu0 0
        %1009 = vmatprep.subr.bf16.mxu0 0
        %1010 = vmatpush1.bf16.msra.mxu0 0
        %1011 = vmatprep.subr.bf16.mxu0 0
        %1012 = vmatpush1.bf16.msra.mxu0 0
        %1013 = vmatprep.subr.bf16.mxu0 0
        %1014 = vmatpush1.bf16.msra.mxu0 0
        %1015 = vmatprep.subr.bf16.mxu0 0
        %1016 = vmatpush1.bf16.msra.mxu0 0
        %1017 = vmatprep.subr.bf16.mxu0 0
        %1018 = vmatpush1.bf16.msra.mxu0 0
        %1019 = vmatprep.subr.bf16.mxu0 0
        %1020 = vmatpush1.bf16.msra.mxu0 0
        %1021 = vmatprep.subr.bf16.mxu0 0
        %1022 = vmatpush1.bf16.msra.mxu0 0
        %1023 = vmatprep.subr.bf16.mxu0 0
        %1024 = vmatpush1.bf16.msra.mxu0 0
        %1025 = vmatprep.subr.bf16.mxu0 0
        %1026 = vmatpush1.bf16.msra.mxu0 0
        %1027 = vmatprep.subr.bf16.mxu0 0
        %1028 = vmatpush1.bf16.msra.mxu0 0
        %1029 = vmatprep.subr.bf16.mxu0 0
        %1030 = vmatpush1.bf16.msra.mxu0 0
        %1031 = vmatprep.mubr.bf16.mxu0 0
        %1032 = vmatmul.mubr.bf16.gmra.mrb[0].mxu0 %v997
        %v1033 = vpop.f32.mrb[0].mxu0
        %v1034 = vadd.f32 %v983, %v1033
        %v1035 = vpop.f32.mrb[0].mxu0
        %v1036 = vpop.f32.mrb[0].mxu0
        %v1037 = vadd.f32 %v983, %v1036
        %v1038 = vpop.f32.mrb[0].mxu0
        %1039 = vdwg.mxu0
        %v1040 = vadd.f32 %v672, %v1034
        %v1041 = vadd.f32 %v673, %v1037
        %v1042 = vmul.f32 %v1040, %v292
        %v1043 = vmul.f32 %v1041, %v297
        %v1044 = vld [vmem:[%s3 + $0x158] sm:$0xf]
        %v1045 = vld [vmem:[%s3 + $0x15c] sm:$0xf]
        %v1046 = vld [vmem:[%s3 + $0x160] sm:$0xf]
        %v1047 = vld [vmem:[%s3 + $0x164] sm:$0xf]
        %v1048 = vld [vmem:[%s4 + $0xa] sm:$0x1]
        %v1049 = vlaneseq
        %v1050 = vshrl.u32 %v1049, 7
        %v1051 = vsub.s32 0, %v1050
        %v1052 = vrot.slane %v1048, %v1051
        %v1057 = vunpack.c.l.b16 %v1044
        %v1058 = vunpack.c.l.b16 %v1045
        %v1059 = vunpack.c.l.b16 %v1046
        %v1060 = vunpack.c.l.b16 %v1047
        %v1061 = vpack.c.b16 %v1058, %v1057
        %v1062 = vpack.c.b16 %v1060, %v1059
        %1065 = vmatprep.subr.bf16.mxu0 0
        %1066 = vmatpush1.bf16.msra.mxu0 %v1061
        %1067 = vmatprep.subr.bf16.mxu0 0
        %1068 = vmatpush1.bf16.msra.mxu0 %v1062
        %1069 = vmatprep.subr.bf16.mxu0 0
        %1070 = vmatpush1.bf16.msra.mxu0 0
        %1071 = vmatprep.subr.bf16.mxu0 0
        %1072 = vmatpush1.bf16.msra.mxu0 0
        %1073 = vmatprep.subr.bf16.mxu0 0
        %1074 = vmatpush1.bf16.msra.mxu0 0
        %1075 = vmatprep.subr.bf16.mxu0 0
        %1076 = vmatpush1.bf16.msra.mxu0 0
        %1077 = vmatprep.subr.bf16.mxu0 0
        %1078 = vmatpush1.bf16.msra.mxu0 0
        %1079 = vmatprep.subr.bf16.mxu0 0
        %1080 = vmatpush1.bf16.msra.mxu0 0
        %1081 = vmatprep.subr.bf16.mxu0 0
        %1082 = vmatpush1.bf16.msra.mxu0 0
        %1083 = vmatprep.subr.bf16.mxu0 0
        %1084 = vmatpush1.bf16.msra.mxu0 0
        %1085 = vmatprep.subr.bf16.mxu0 0
        %1086 = vmatpush1.bf16.msra.mxu0 0
        %1087 = vmatprep.subr.bf16.mxu0 0
        %1088 = vmatpush1.bf16.msra.mxu0 0
        %1089 = vmatprep.subr.bf16.mxu0 0
        %1090 = vmatpush1.bf16.msra.mxu0 0
        %1091 = vmatprep.subr.bf16.mxu0 0
        %1092 = vmatpush1.bf16.msra.mxu0 0
        %1093 = vmatprep.subr.bf16.mxu0 0
        %1094 = vmatpush1.bf16.msra.mxu0 0
        %1095 = vmatprep.subr.bf16.mxu0 0
        %1096 = vmatpush1.bf16.msra.mxu0 0
        %1097 = vmatprep.mubr.bf16.mxu0 0
        %1098 = vmatmul.mubr.bf16.gmra.mrb[0].mxu0 %v997
        %v1099 = vpop.f32.mrb[0].mxu0
        %v1100 = vadd.f32 %v1052, %v1099
        %v1101 = vpop.f32.mrb[0].mxu0
        %v1102 = vpop.f32.mrb[0].mxu0
        %v1103 = vadd.f32 %v1052, %v1102
        %v1104 = vpop.f32.mrb[0].mxu0
        %1105 = vdwg.mxu0
        %v1106 = vadd.f32 %v736, %v1100
        %v1107 = vadd.f32 %v737, %v1103
        %1108 = vst.msk [vmem:[#allocation2 + $0x8] sm:$0xff] %vm300, %v1042
        %1109 = vst.msk [vmem:[#allocation2 + $0x10] sm:$0xff] %vm300, %v1043
        %v1110 = vld [vmem:[#allocation2 + $0x4] sm:$0xff]
        %v1111 = vld [vmem:[#allocation2 + $0xc] sm:$0xff]
        %v1112 = vld [vmem:[#allocation2 + $0x8] sm:$0xff]
        %v1113 = vld [vmem:[#allocation2 + $0x10] sm:$0xff]
        %v1114 = vld [vmem:[#allocation2 + $0x14] sm:$0xff]
        %1117 = vrot.lane.b32.xlu0 %v1112, 32
        %v1118 = vpop.permute.xlu0 %1117
        %1119 = vrot.lane.b32.xlu0 %v1113, 32
        %v1120 = vpop.permute.xlu0 %1119
        %1125 = vrot.lane.b32.xlu0 %v1111, 64
        %v1126 = vpop.permute.xlu0 %1125
        %1127 = vrot.lane.b32.xlu0 %v1114, 64
        %v1128 = vpop.permute.xlu0 %1127
        %v1131 = vsel %vm300, %v1110, %v1118
        %v1132 = vsel %vm300, %v1111, %v1120
        %v1133 = vsel %vm392, %v1131, %v1126
        %v1134 = vsel %vm392, %v1132, %v1128
        %v1135 = vpack.c.bf16 %v1134, %v1133
        %v1136 = vld [vmem:[%s3 + $0x68] sm:$0xf]
        %v1137 = vld [vmem:[%s3 + $0x6c] sm:$0xf]
        %v1138 = vld [vmem:[%s3 + $0x70] sm:$0xf]
        %v1139 = vld [vmem:[%s3 + $0x74] sm:$0xf]
        %v1140 = vld [vmem:[%s3 + $0x78] sm:$0xf]
        %v1141 = vld [vmem:[%s3 + $0x7c] sm:$0xf]
        %v1142 = vld [vmem:[%s3 + $0x80] sm:$0xf]
        %v1143 = vld [vmem:[%s3 + $0x84] sm:$0xf]
        %v1144 = vld [vmem:[%s3 + $0x88] sm:$0xf]
        %v1145 = vld [vmem:[%s3 + $0x8c] sm:$0xf]
        %v1146 = vld [vmem:[%s3 + $0x90] sm:$0xf]
        %v1147 = vld [vmem:[%s3 + $0x94] sm:$0xf]
        %v1148 = vld [vmem:[%s4 + $0x3] sm:$0x1]
        %v1149 = vlaneseq
        %v1150 = vshrl.u32 %v1149, 7
        %v1151 = vsub.s32 0, %v1150
        %v1152 = vrot.slane %v1148, %v1151
        %v1165 = vunpack.c.l.b16 %v1136
        %v1166 = vunpack.c.l.b16 %v1137
        %v1167 = vunpack.c.l.b16 %v1138
        %v1168 = vunpack.c.l.b16 %v1139
        %v1169 = vunpack.c.l.b16 %v1140
        %v1170 = vunpack.c.l.b16 %v1141
        %v1171 = vunpack.c.l.b16 %v1142
        %v1172 = vunpack.c.l.b16 %v1143
        %v1173 = vunpack.c.l.b16 %v1144
        %v1174 = vunpack.c.l.b16 %v1145
        %v1175 = vunpack.c.l.b16 %v1146
        %v1176 = vunpack.c.l.b16 %v1147
        %v1177 = vpack.c.b16 %v1166, %v1165
        %v1178 = vpack.c.b16 %v1168, %v1167
        %v1179 = vpack.c.b16 %v1170, %v1169
        %v1180 = vpack.c.b16 %v1172, %v1171
        %v1181 = vpack.c.b16 %v1174, %v1173
        %v1182 = vpack.c.b16 %v1176, %v1175
        %v1190 = vsel %vm449, %v1135, 0
        %1192 = vmatprep.subr.bf16.mxu0 0
        %1193 = vmatpush1.bf16.msra.mxu0 %v1177
        %1194 = vmatprep.subr.bf16.mxu0 0
        %1195 = vmatpush1.bf16.msra.mxu0 %v1178
        %1196 = vmatprep.subr.bf16.mxu0 0
        %1197 = vmatpush1.bf16.msra.mxu0 %v1179
        %1198 = vmatprep.subr.bf16.mxu0 0
        %1199 = vmatpush1.bf16.msra.mxu0 %v1180
        %1200 = vmatprep.subr.bf16.mxu0 0
        %1201 = vmatpush1.bf16.msra.mxu0 %v1181
        %1202 = vmatprep.subr.bf16.mxu0 0
        %1203 = vmatpush1.bf16.msra.mxu0 %v1182
        %1204 = vmatprep.subr.bf16.mxu0 0
        %1205 = vmatpush1.bf16.msra.mxu0 0
        %1206 = vmatprep.subr.bf16.mxu0 0
        %1207 = vmatpush1.bf16.msra.mxu0 0
        %1208 = vmatprep.subr.bf16.mxu0 0
        %1209 = vmatpush1.bf16.msra.mxu0 0
        %1210 = vmatprep.subr.bf16.mxu0 0
        %1211 = vmatpush1.bf16.msra.mxu0 0
        %1212 = vmatprep.subr.bf16.mxu0 0
        %1213 = vmatpush1.bf16.msra.mxu0 0
        %1214 = vmatprep.subr.bf16.mxu0 0
        %1215 = vmatpush1.bf16.msra.mxu0 0
        %1216 = vmatprep.subr.bf16.mxu0 0
        %1217 = vmatpush1.bf16.msra.mxu0 0
        %1218 = vmatprep.subr.bf16.mxu0 0
        %1219 = vmatpush1.bf16.msra.mxu0 0
        %1220 = vmatprep.subr.bf16.mxu0 0
        %1221 = vmatpush1.bf16.msra.mxu0 0
        %1222 = vmatprep.subr.bf16.mxu0 0
        %1223 = vmatpush1.bf16.msra.mxu0 0
        %1224 = vmatprep.mubr.bf16.mxu0 0
        %1225 = vmatmul.mubr.bf16.gmra.mrb[0].mxu0 %v1190
        %v1226 = vpop.f32.mrb[0].mxu0
        %v1227 = vadd.f32 %v1152, %v1226
        %v1228 = vpop.f32.mrb[0].mxu0
        %v1229 = vpop.f32.mrb[0].mxu0
        %v1230 = vadd.f32 %v1152, %v1229
        %v1231 = vpop.f32.mrb[0].mxu0
        %1232 = vdwg.mxu0
        %v1233 = vld [vmem:[%s3 + $0xf8] sm:$0xf]
        %v1234 = vld [vmem:[%s3 + $0xfc] sm:$0xf]
        %v1235 = vld [vmem:[%s3 + $0x100] sm:$0xf]
        %v1236 = vld [vmem:[%s3 + $0x104] sm:$0xf]
        %v1237 = vld [vmem:[%s3 + $0x108] sm:$0xf]
        %v1238 = vld [vmem:[%s3 + $0x10c] sm:$0xf]
        %v1239 = vld [vmem:[%s3 + $0x110] sm:$0xf]
        %v1240 = vld [vmem:[%s3 + $0x114] sm:$0xf]
        %v1241 = vld [vmem:[%s3 + $0x118] sm:$0xf]
        %v1242 = vld [vmem:[%s3 + $0x11c] sm:$0xf]
        %v1243 = vld [vmem:[%s3 + $0x120] sm:$0xf]
        %v1244 = vld [vmem:[%s3 + $0x124] sm:$0xf]
        %v1245 = vld [vmem:[%s4 + $0x6] sm:$0x1]
        %v1246 = vlaneseq
        %v1247 = vshrl.u32 %v1246, 7
        %v1248 = vsub.s32 0, %v1247
        %v1249 = vrot.slane %v1245, %v1248
        %v1262 = vunpack.c.l.b16 %v1233
        %v1263 = vunpack.c.l.b16 %v1234
        %v1264 = vunpack.c.l.b16 %v1235
        %v1265 = vunpack.c.l.b16 %v1236
        %v1266 = vunpack.c.l.b16 %v1237
        %v1267 = vunpack.c.l.b16 %v1238
        %v1268 = vunpack.c.l.b16 %v1239
        %v1269 = vunpack.c.l.b16 %v1240
        %v1270 = vunpack.c.l.b16 %v1241
        %v1271 = vunpack.c.l.b16 %v1242
        %v1272 = vunpack.c.l.b16 %v1243
        %v1273 = vunpack.c.l.b16 %v1244
        %v1274 = vpack.c.b16 %v1263, %v1262
        %v1275 = vpack.c.b16 %v1265, %v1264
        %v1276 = vpack.c.b16 %v1267, %v1266
        %v1277 = vpack.c.b16 %v1269, %v1268
        %v1278 = vpack.c.b16 %v1271, %v1270
        %v1279 = vpack.c.b16 %v1273, %v1272
        %1286 = vmatprep.subr.bf16.mxu0 0
        %1287 = vmatpush1.bf16.msra.mxu0 %v1274
        %1288 = vmatprep.subr.bf16.mxu0 0
        %1289 = vmatpush1.bf16.msra.mxu0 %v1275
        %1290 = vmatprep.subr.bf16.mxu0 0
        %1291 = vmatpush1.bf16.msra.mxu0 %v1276
        %1292 = vmatprep.subr.bf16.mxu0 0
        %1293 = vmatpush1.bf16.msra.mxu0 %v1277
        %1294 = vmatprep.subr.bf16.mxu0 0
        %1295 = vmatpush1.bf16.msra.mxu0 %v1278
        %1296 = vmatprep.subr.bf16.mxu0 0
        %1297 = vmatpush1.bf16.msra.mxu0 %v1279
        %1298 = vmatprep.subr.bf16.mxu0 0
        %1299 = vmatpush1.bf16.msra.mxu0 0
        %1300 = vmatprep.subr.bf16.mxu0 0
        %1301 = vmatpush1.bf16.msra.mxu0 0
        %1302 = vmatprep.subr.bf16.mxu0 0
        %1303 = vmatpush1.bf16.msra.mxu0 0
        %1304 = vmatprep.subr.bf16.mxu0 0
        %1305 = vmatpush1.bf16.msra.mxu0 0
        %1306 = vmatprep.subr.bf16.mxu0 0
        %1307 = vmatpush1.bf16.msra.mxu0 0
        %1308 = vmatprep.subr.bf16.mxu0 0
        %1309 = vmatpush1.bf16.msra.mxu0 0
        %1310 = vmatprep.subr.bf16.mxu0 0
        %1311 = vmatpush1.bf16.msra.mxu0 0
        %1312 = vmatprep.subr.bf16.mxu0 0
        %1313 = vmatpush1.bf16.msra.mxu0 0
        %1314 = vmatprep.subr.bf16.mxu0 0
        %1315 = vmatpush1.bf16.msra.mxu0 0
        %1316 = vmatprep.subr.bf16.mxu0 0
        %1317 = vmatpush1.bf16.msra.mxu0 0
        %1318 = vmatprep.mubr.bf16.mxu0 0
        %1319 = vmatmul.mubr.bf16.gmra.mrb[0].mxu0 %v1190
        %v1320 = vpop.f32.mrb[0].mxu0
        %v1321 = vadd.f32 %v1249, %v1320
        %v1322 = vpop.f32.mrb[0].mxu0
        %v1323 = vpop.f32.mrb[0].mxu0
        %v1324 = vadd.f32 %v1249, %v1323
        %v1325 = vpop.f32.mrb[0].mxu0
        %1326 = vdwg.mxu0
        %v1327 = vtanh.pop %v1227
        %v1328 = vtanh.pop %v1230
        %v1329 = vxor.u32 %v1321, 2147483648
        %v1330 = vxor.u32 %v1324, 2147483648
        %v1331 = vmul.f32 %v1329, 1.442695
        %v1332 = vpow.pop %v1331
        %v1333 = vmul.f32 %v1330, 1.442695
        %v1334 = vpow.pop %v1333
        %v1335 = vadd.f32 %v1332, 1.0
        %v1336 = vadd.f32 %v1334, 1.0
        %v1337 = vrcp.pop %v1335
        %v1338 = vmul.f32 1.0, %v1337
        %v1339 = vrcp.pop %v1336
        %v1340 = vmul.f32 1.0, %v1339
        %v1341 = vmul.f32 %v1327, %v1338
        %v1342 = vmul.f32 %v1328, %v1340
        %v1343 = vpack.c.bf16 %v1342, %v1341
        %v1344 = vld [vmem:[%s3 + $0x168] sm:$0xf]
        %v1345 = vld [vmem:[%s3 + $0x16c] sm:$0xf]
        %v1346 = vld [vmem:[%s3 + $0x170] sm:$0xf]
        %v1347 = vld [vmem:[%s3 + $0x174] sm:$0xf]
        %v1348 = vld [vmem:[%s4 + $0xb] sm:$0x1]
        %v1349 = vlaneseq
        %v1350 = vshrl.u32 %v1349, 7
        %v1351 = vsub.s32 0, %v1350
        %v1352 = vrot.slane %v1348, %v1351
        %v1357 = vunpack.c.l.b16 %v1344
        %v1358 = vunpack.c.l.b16 %v1345
        %v1359 = vunpack.c.l.b16 %v1346
        %v1360 = vunpack.c.l.b16 %v1347
        %v1361 = vpack.c.b16 %v1358, %v1357
        %v1362 = vpack.c.b16 %v1360, %v1359
        %v1366 = vsel %vm300, %v1343, 0
        %1368 = vmatprep.subr.bf16.mxu0 0
        %1369 = vmatpush1.bf16.msra.mxu0 %v1361
        %1370 = vmatprep.subr.bf16.mxu0 0
        %1371 = vmatpush1.bf16.msra.mxu0 %v1362
        %1372 = vmatprep.subr.bf16.mxu0 0
        %1373 = vmatpush1.bf16.msra.mxu0 0
        %1374 = vmatprep.subr.bf16.mxu0 0
        %1375 = vmatpush1.bf16.msra.mxu0 0
        %1376 = vmatprep.subr.bf16.mxu0 0
        %1377 = vmatpush1.bf16.msra.mxu0 0
        %1378 = vmatprep.subr.bf16.mxu0 0
        %1379 = vmatpush1.bf16.msra.mxu0 0
        %1380 = vmatprep.subr.bf16.mxu0 0
        %1381 = vmatpush1.bf16.msra.mxu0 0
        %1382 = vmatprep.subr.bf16.mxu0 0
        %1383 = vmatpush1.bf16.msra.mxu0 0
        %1384 = vmatprep.subr.bf16.mxu0 0
        %1385 = vmatpush1.bf16.msra.mxu0 0
        %1386 = vmatprep.subr.bf16.mxu0 0
        %1387 = vmatpush1.bf16.msra.mxu0 0
        %1388 = vmatprep.subr.bf16.mxu0 0
        %1389 = vmatpush1.bf16.msra.mxu0 0
        %1390 = vmatprep.subr.bf16.mxu0 0
        %1391 = vmatpush1.bf16.msra.mxu0 0
        %1392 = vmatprep.subr.bf16.mxu0 0
        %1393 = vmatpush1.bf16.msra.mxu0 0
        %1394 = vmatprep.subr.bf16.mxu0 0
        %1395 = vmatpush1.bf16.msra.mxu0 0
        %1396 = vmatprep.subr.bf16.mxu0 0
        %1397 = vmatpush1.bf16.msra.mxu0 0
        %1398 = vmatprep.subr.bf16.mxu0 0
        %1399 = vmatpush1.bf16.msra.mxu0 0
        %1400 = vmatprep.mubr.bf16.mxu0 0
        %1401 = vmatmul.mubr.bf16.gmra.mrb[0].mxu0 %v1366
        %v1402 = vpop.f32.mrb[0].mxu0
        %v1403 = vadd.f32 %v1352, %v1402
        %v1404 = vpop.f32.mrb[0].mxu0
        %v1405 = vpop.f32.mrb[0].mxu0
        %v1406 = vadd.f32 %v1352, %v1405
        %v1407 = vpop.f32.mrb[0].mxu0
        %1408 = vdwg.mxu0
        %v1409 = vadd.f32 %v1106, %v1403
        %v1410 = vadd.f32 %v1107, %v1406
        %v1411 = vmul.f32 %v1409, %v292
        %v1412 = vmul.f32 %v1410, %v297
        %1413 = vxpose.xlu0.b32.start [1/16] %v1411, 128
        %1414 = vxpose.xlu0.b32.cont [2/16] %v1412, 128
        %1415 = vxpose.xlu0.b32.cont [3/16] 0.0, 128
        %1416 = vxpose.xlu0.b32.cont [4/16] 0.0, 128
        %1417 = vxpose.xlu0.b32.cont [5/16] 0.0, 128
        %1418 = vxpose.xlu0.b32.cont [6/16] 0.0, 128
        %1419 = vxpose.xlu0.b32.cont [7/16] 0.0, 128
        %1420 = vxpose.xlu0.b32.cont [8/16] 0.0, 128
        %1421 = vxpose.xlu0.b32.cont [9/16] 0.0, 128
        %1422 = vxpose.xlu0.b32.cont [10/16] 0.0, 128
        %1423 = vxpose.xlu0.b32.cont [11/16] 0.0, 128
        %1424 = vxpose.xlu0.b32.cont [12/16] 0.0, 128
        %1425 = vxpose.xlu0.b32.cont [13/16] 0.0, 128
        %1426 = vxpose.xlu0.b32.cont [14/16] 0.0, 128
        %1427 = vxpose.xlu0.b32.cont [15/16] 0.0, 128
        %1428 = vxpose.xlu0.b32.end [16/16] 0.0, 128
        %v1429 = vpop.trf.xlu0
        %v1430 = vpop.trf.xlu0
        %v1431 = vpop.trf.xlu0
        %v1432 = vpop.trf.xlu0
        %v1433 = vpop.trf.xlu0
        %v1434 = vpop.trf.xlu0
        %v1435 = vpop.trf.xlu0
        %v1436 = vpop.trf.xlu0
        %v1437 = vpop.trf.xlu0
        %v1438 = vpop.trf.xlu0
        %v1439 = vpop.trf.xlu0
        %v1440 = vpop.trf.xlu0
        %v1441 = vpop.trf.xlu0
        %v1442 = vpop.trf.xlu0
        %v1443 = vpop.trf.xlu0
        %v1444 = vpop.trf.xlu0
        %v1445 = vpack.c.bf16 %v1430, %v1429
        %v1446 = vpack.c.bf16 %v1432, %v1431
        %v1447 = vld [vmem:[%s3 + $0x178] sm:$0xf]
        %v1448 = vld [vmem:[%s3 + $0x17c] sm:$0xf]
        %v1449 = vld [vmem:[%s5] sm:$0xff]
        %v1450 = vld [vmem:[%s5 + $0x8] sm:$0xff]
        %1452 = vset.pattern.permute.xlu0 0
        %1453 = vperm.xlu0 %1452, %v1449
        %v1454 = vpop.permute.xlu0 %1453
        %1457 = vset.pattern.permute.xlu0 0
        %1458 = vperm.xlu0 %1457, %v1450
        %v1459 = vpop.permute.xlu0 %1458
        %v1463 = vunpack.c.l.b16 %v1447
        %v1464 = vunpack.c.l.b16 %v1448
        %v1465 = vpack.c.b16 %v1464, %v1463
        %v1467 = vsel %vm300, %v1465, 0
        %1469 = vmatprep.subr.bf16.mxu0 0
        %1470 = vmatpush1.bf16.msra.mxu0 %v1445
        %1471 = vmatprep.subr.bf16.mxu0 0
        %1472 = vmatpush1.bf16.msra.mxu0 %v1446
        %1473 = vmatprep.subr.bf16.mxu0 0
        %1474 = vmatpush1.bf16.msra.mxu0 0
        %1475 = vmatprep.subr.bf16.mxu0 0
        %1476 = vmatpush1.bf16.msra.mxu0 0
        %1477 = vmatprep.subr.bf16.mxu0 0
        %1478 = vmatpush1.bf16.msra.mxu0 0
        %1479 = vmatprep.subr.bf16.mxu0 0
        %1480 = vmatpush1.bf16.msra.mxu0 0
        %1481 = vmatprep.subr.bf16.mxu0 0
        %1482 = vmatpush1.bf16.msra.mxu0 0
        %1483 = vmatprep.subr.bf16.mxu0 0
        %1484 = vmatpush1.bf16.msra.mxu0 0
        %1485 = vmatprep.subr.bf16.mxu0 0
        %1486 = vmatpush1.bf16.msra.mxu0 0
        %1487 = vmatprep.subr.bf16.mxu0 0
        %1488 = vmatpush1.bf16.msra.mxu0 0
        %1489 = vmatprep.subr.bf16.mxu0 0
        %1490 = vmatpush1.bf16.msra.mxu0 0
        %1491 = vmatprep.subr.bf16.mxu0 0
        %1492 = vmatpush1.bf16.msra.mxu0 0
        %1493 = vmatprep.subr.bf16.mxu0 0
        %1494 = vmatpush1.bf16.msra.mxu0 0
        %1495 = vmatprep.subr.bf16.mxu0 0
        %1496 = vmatpush1.bf16.msra.mxu0 0
        %1497 = vmatprep.subr.bf16.mxu0 0
        %1498 = vmatpush1.bf16.msra.mxu0 0
        %1499 = vmatprep.subr.bf16.mxu0 0
        %1500 = vmatpush1.bf16.msra.mxu0 0
        %1501 = vmatprep.mubr.bf16.mxu0 0
        %1502 = vmatmul.mubr.bf16.gmra.mrb[0].mxu0 %v1467
        %v1503 = vpop.f32.mrb[0].mxu0
        %v1504 = vadd.f32 %v1454, %v1503
        %v1505 = vpop.f32.mrb[0].mxu0
        %v1506 = vpop.f32.mrb[0].mxu0
        %v1507 = vadd.f32 %v1459, %v1506
        %v1508 = vpop.f32.mrb[0].mxu0
        %1509 = vdwg.mxu0
        %v1511 = vlaneseq
        %v1512 = vshrl.u32 %v1511, 7
        %v1513 = vsub.s32 0, %v1512
        %v1514 = vrot.slane %v299, %v1513
        %v1516 = vmul.f32 %v1504, %v1514
        %v1517 = vmul.f32 %v1507, %v1514
        %1518 = vst.msk [vmem:[%s270] sm:$0xff] %vm319, %v1516
        %1519 = vst.msk [vmem:[%s270 + $0x8] sm:$0xff] %vm319, %v1517
        %s1520 = sand.u32 %s169, 1
        %s1521 = scalar_lea.sflag [#allocation4], %s1520
        %s1522 = sand.u32 %s169, 1
        %s1523 = smul.addr %s1522, 16
        %s1524 = scalar_lea.vmem [#allocation3], %s1523
        // Predicated region
        $region45: #{tpu_custom_call.1} parent=43 // pred_check
          %p1525 = pneg %p179
        $region46: #{tpu_custom_call.1} parent=43 // pred_check_branch
          %1527 = sbr.rel (%p1525) target = $region48
        $region47: #{tpu_custom_call.1} parent=43 // pred_region
          %s1529 = ssub.s32 256, 256
          %1530 = vsyncadd %s1521, %s1529
          %s1531 = smul.addr %s20, 2
          %s1532 = smul.addr %s1531, 128
          %s1533 = scalar_lea.hbm %s6, %s1532
          %s1534 = sshll.u32 %s1524, 4
          %s1535 = int_to_ptr.vmem [resolvable:$true] %s1534
          %1540 = dma.vmem_to_hbm [thread:$0]  %s1535, 256, %s1533, %s1521, 128, 128, 8
        $region48: #{tpu_custom_call.1} parent=43 // pred_fallthru
          _
      $region44: #{tpu_custom_call.1} parent=5 // pred_fallthru
        _
      %p1541 = scmp.le.s32.totalorder 2, %s15
      // Predicated region
      $region49: #{tpu_custom_call.1} parent=5 // pred_check
        %p1542 = pneg %p1541
      $region50: #{tpu_custom_call.1} parent=5 // pred_check_branch
        %1544 = sbr.rel (%p1542) target = $region52
      $region51: #{tpu_custom_call.1} parent=5 // pred_region
        %s1545 = ssub.s32 %s15, 2
        // Predicated region
        $region53: #{tpu_custom_call.1} parent=51 // pred_check
          %p1546 = pneg %p185
        $region54: #{tpu_custom_call.1} parent=51 // pred_check_branch
          %1548 = sbr.rel (%p1546) target = $region56
        $region55: #{tpu_custom_call.1} parent=51 // pred_region
          %s1549 = sand.u32 %s170, 1
          %s1550 = scalar_lea.sflag [#allocation4], %s1549
          %s1551 = sand.u32 %s170, 1
          %s1552 = smul.addr %s1551, 16
          %s1553 = scalar_lea.vmem [#allocation3], %s1552
          %1554 = dma.done %s1550, 256
        $region56: #{tpu_custom_call.1} parent=51 // pred_fallthru
          _
      $region52: #{tpu_custom_call.1} parent=5 // pred_fallthru
        _
    $region6: #{tpu_custom_call.1} parent=1 // loop_footer
      %s19 = sadd.s32 1, %s15
    $region7: #{tpu_custom_call.1} parent=1 // loop_footer_branch
      %14 = sbr.rel target = $region3
    $region8: #{tpu_custom_call.1} parent=1 // loop_exit
      _
    %1555 = vsyncpa [#allocation4], 1
    %s1556 = scalar_lea.sflag [#allocation4], 1
    %1557 = vsyncpa %s1556, 1

</llo_original>
